<compile_context>
chip_gen: v7x
topology: tpu7x:2x2x1
jax: 0.10.0
libtpu: 0.0.40
codegen_flags: <defaults>
</compile_context>

<pallas_src>
import functools
import math

import jax
import jax.numpy as jnp
from jax.experimental import pallas as pl
from jax.experimental.pallas import tpu as pltpu


def _gat_kernel(x_ref, w_ref, a_ref, adj_ref, out_ref,
                h_ref, f2_ref, *, alpha, tq, use_bf16):
    # x_ref:   (1, N, C)   VMEM, resident across the tile axis
    # w_ref:   (C, Fp)     VMEM
    # a_ref:   (2, Fp)     VMEM   row 0 = a[:F], row 1 = a[F:]
    # adj_ref: (1, TQ, N)  VMEM   int8 adjacency tile
    # out_ref: (1, TQ, Fp) VMEM
    # h_ref:   (N, Fp)     VMEM scratch, bf16 (or f32), per-batch h = x @ W
    # f2_ref:  (1, N)      VMEM scratch, f32, per-batch h · a2 (row layout)

    @pl.when(pl.program_id(1) == 0)
    def _per_batch_init():
        x = x_ref[0]                          # (N, C)
        w = w_ref[...]                        # (C, Fp)
        if use_bf16:
            h = jnp.dot(x.astype(jnp.bfloat16), w.astype(jnp.bfloat16),
                        preferred_element_type=jnp.float32)
        else:
            h = jnp.dot(x, w, preferred_element_type=jnp.float32)
        a2 = a_ref[1:2, :]                                   # (1, Fp)
        f2_col = jnp.sum(h * a2, axis=-1, keepdims=True)     # (N, 1)
        f2_ref[...] = jnp.transpose(f2_col)                  # (1, N) row layout
        h_ref[...] = h.astype(h_ref.dtype)    # single bf16 store per batch

    row0 = pl.multiple_of(pl.program_id(1) * tq, tq)

    # f1 for this query tile: tiny per-tile reduction over the (TQ, Fp) slice
    # of h (avoids a lane-padded (N,1) scratch and dynamic lane slicing).
    h_q = h_ref[pl.ds(row0, tq), :]                              # (TQ, Fp)
    a1 = a_ref[0:1, :]                                           # (1, Fp)
    f1_q = jnp.sum(h_q.astype(jnp.float32) * a1,
                   axis=-1, keepdims=True)                       # (TQ, 1)

    # e[i, j] = LeakyReLU(f1[i] + f2[j]); LeakyReLU folded under the mask.
    e = f1_q + f2_ref[...]                    # (TQ, N)
    adj = adj_ref[0]                          # (TQ, N) int8
    att = jnp.where(adj != 0, jnp.maximum(e, alpha * e), -9e15)

    # softmax over the key axis
    m = jnp.max(att, axis=-1, keepdims=True)
    p = jnp.exp(att - m)
    denom = jnp.sum(p, axis=-1, keepdims=True)
    att = p * pl.reciprocal(denom, approx=True)

    # h_prime = att @ h  (h already stored in the MXU input dtype)
    h_all = h_ref[...]
    h_prime = jnp.dot(att.astype(h_all.dtype), h_all,
                      preferred_element_type=jnp.float32)

    # concat=True -> ELU (clamp exp argument so the unselected branch is finite)
    out = jnp.where(h_prime > 0, h_prime,
                    jnp.exp(jnp.minimum(h_prime, 0.0)) - 1.0)
    out_ref[0] = out.astype(out_ref.dtype)


def _pick_tile(n, c, f_pad, h_bytes, budget, max_tq=1024):
    """Largest query tile (multiple of 32, divides N) fitting the VMEM budget."""
    def est(t):
        return (2 * t * n                 # adj tiles (int8, double-buffered)
                + 2 * t * f_pad * 4       # out tiles (f32, double-buffered)
                + 2 * n * c * 4           # x slab (double-buffered)
                + 2 * c * f_pad * 4       # W
                + 4 * f_pad * 4           # a rows
                + n * f_pad * h_bytes     # h scratch
                + 8 * n * 4               # f2 scratch (sublane-padded)
                + 5 * t * n * 4)          # e/p/att temporaries headroom

    cands = {t for t in range(32, min(n, max_tq) + 1, 32) if n % t == 0}
    if n <= max_tq:
        cands.add(n)                      # full extent is always layout-legal
    if not cands:
        cands = {n}
    fitting = [t for t in cands if est(t) <= budget]
    return max(fitting) if fitting else min(cands)


def gat_forward(x, adj, W, a, alpha, *, use_bf16=True, max_tile_q=1024):
    """x: (B, N, C) f32, adj: (B, N, N) (int8/bool mask or float; nonzero = edge),
    W: (C, F), a: (2F, 1).

    Returns ELU(softmax(mask(LeakyReLU(e))) @ (x @ W)) of shape (B, N, F).
    """
    B, N, C = x.shape
    F_out = W.shape[1]

    # Lane-dense output: pad the feature dim to a multiple of 128.
    F_pad = ((F_out + 127) // 128) * 128
    if F_pad != F_out:
        W_p = jnp.zeros((C, F_pad), jnp.float32).at[:, :F_out].set(
            W.astype(jnp.float32))
        a1 = jnp.zeros((F_pad,), jnp.float32).at[:F_out].set(
            a[:F_out, 0].astype(jnp.float32))
        a2 = jnp.zeros((F_pad,), jnp.float32).at[:F_out].set(
            a[F_out:, 0].astype(jnp.float32))
    else:
        W_p = W.astype(jnp.float32)
        a1 = a[:F_out, 0].astype(jnp.float32)
        a2 = a[F_out:, 0].astype(jnp.float32)
    a_rows = jnp.stack([a1, a2], axis=0)          # (2, F_pad)

    # Accept a precomputed int8/bool mask directly (no redundant HBM pass).
    if adj.dtype == jnp.int8:
        adj_i8 = adj
    elif adj.dtype == jnp.bool_:
        adj_i8 = adj.astype(jnp.int8)
    else:
        adj_i8 = (adj > 0).astype(jnp.int8)

    # Chip-aware VMEM budget.
    try:
        vmem_cap = int(pltpu.get_tpu_info().vmem_capacity_bytes)
    except Exception:
        vmem_cap = 64 * 1024 * 1024       # conservative (v7x-sized) fallback
    budget = int(0.75 * vmem_cap)

    h_bytes = 2 if use_bf16 else 4
    tq = _pick_tile(N, C, F_pad, h_bytes, budget, max_tile_q)
    grid = (B, N // tq)

    kernel = functools.partial(_gat_kernel, alpha=float(alpha), tq=tq,
                               use_bf16=use_bf16)

    out = pl.pallas_call(
        kernel,
        out_shape=jax.ShapeDtypeStruct((B, N, F_pad), jnp.float32),
        grid_spec=pltpu.PrefetchScalarGridSpec(
            num_scalar_prefetch=0,
            grid=grid,
            in_specs=[
                pl.BlockSpec((1, N, C), lambda b, i: (b, 0, 0)),      # x (per batch)
                pl.BlockSpec((C, F_pad), lambda b, i: (0, 0)),        # W
                pl.BlockSpec((2, F_pad), lambda b, i: (0, 0)),        # a rows
                pl.BlockSpec((1, tq, N), lambda b, i: (b, i, 0)),     # adj tile (int8)
            ],
            out_specs=pl.BlockSpec((1, tq, F_pad), lambda b, i: (b, i, 0)),
            scratch_shapes=[
                pltpu.VMEM((N, F_pad),
                           jnp.bfloat16 if use_bf16 else jnp.float32),  # h
                pltpu.VMEM((1, N), jnp.float32),                        # f2 row
            ],
        ),
        compiler_params=pltpu.CompilerParams(
            dimension_semantics=("parallel", "arbitrary"),
            vmem_limit_bytes=budget,
        ),
    )(x.astype(jnp.float32), W_p, a_rows, adj_i8)

    return out[..., :F_out] if F_pad != F_out else out


def _xavier_uniform(key, shape, gain):
    fan_in, fan_out = shape[0], shape[1]
    bound = gain * math.sqrt(6.0 / (fan_in + fan_out))
    return jax.random.uniform(key, shape, dtype=jnp.float32,
                              minval=-bound, maxval=bound)


def gat_reference(x, adj, W, a, alpha):
    """Pure-JAX reference mirroring the PyTorch forward (eval mode)."""
    F_out = W.shape[1]
    h = jnp.einsum("bnc,cf->bnf", x, W)
    f1 = jnp.einsum("bnf,f->bn", h, a[:F_out, 0])
    f2 = jnp.einsum("bnf,f->bn", h, a[F_out:, 0])
    e = f1[:, :, None] + f2[:, None, :]
    e = jnp.where(e > 0, e, alpha * e)
    att = jnp.where(adj > 0, e, -9e15)
    att = jax.nn.softmax(att, axis=2)
    h_prime = jnp.einsum("bij,bjf->bif", att, h)
    return jnp.where(h_prime > 0, h_prime, jnp.exp(h_prime) - 1.0)


if __name__ == "__main__":
    B, N = 2, 256
    in_features, out_features = 64, 128
    alpha = 0.2
    dropout = 0.6   # unused (eval mode)

    key = jax.random.PRNGKey(0)
    kx, kadj, kW, ka = jax.random.split(key, 4)

    x = jax.random.normal(kx, (B, N, in_features), dtype=jnp.float32)
    # adjacency built directly as an int8 mask (no per-call float->int8 pass);
    # guarantee every node has at least one neighbor (self-loop).
    adj_i8 = (jax.random.uniform(kadj, (B, N, N)) > 0.5).astype(jnp.int8)
    adj_i8 = jnp.maximum(adj_i8, jnp.eye(N, dtype=jnp.int8)[None, :, :])

    W = _xavier_uniform(kW, (in_features, out_features), gain=1.414)
    a = _xavier_uniform(ka, (2 * out_features, 1), gain=1.414)

    ref = gat_reference(x, adj_i8, W, a, alpha)

    # default path: bf16 MXU inputs, f32 accumulation (v5e/v6e/v7x fast path)
    out_bf16 = jax.block_until_ready(gat_forward(x, adj_i8, W, a, alpha))
    assert out_bf16.shape == (B, N, out_features)
    assert jnp.allclose(out_bf16, ref, atol=5e-2, rtol=5e-2), "bf16 kernel mismatch"

    # f32 MXU path (approx reciprocal in softmax -> slightly looser than 1e-4)
    out_f32 = jax.block_until_ready(
        gat_forward(x, adj_i8, W, a, alpha, use_bf16=False))
    assert out_f32.shape == (B, N, out_features)
    assert jnp.allclose(out_f32, ref, atol=5e-3, rtol=5e-3), "f32 kernel mismatch"

    print("KERNEL_OK")
</pallas_src>

<mosaic_0001>
module attributes {stable_mosaic.version = 11 : i64} {
  func.func @_gat_kernel(%arg0: i32, %arg1: i32, %arg2: memref<1x256x64xf32, #tpu.memory_space<vmem>>, %arg3: memref<64x128xf32, #tpu.memory_space<vmem>>, %arg4: memref<2x128xf32, #tpu.memory_space<vmem>>, %arg5: memref<1x256x256xi8, #tpu.memory_space<vmem>>, %arg6: memref<1x256x128xf32, #tpu.memory_space<vmem>>, %arg7: memref<256x128xbf16, #tpu.memory_space<vmem>>, %arg8: memref<1x256xf32, #tpu.memory_space<vmem>>) attributes {dimension_semantics = [#tpu.dimension_semantics<parallel>, #tpu.dimension_semantics<arbitrary>], iteration_bounds = array<i64: 2, 1>, scalar_prefetch = 0 : i64, scratch_operands = 2 : i64, tpu.core_type = #tpu.core_type<tc>, window_params = [{transform_indices = @transform_0, window_bounds = array<i64: 1, 256, 64>}, {pipeline_mode = #tpu.pipeline_mode<synchronous>, transform_indices = @transform_1, window_bounds = array<i64: 64, 128>}, {pipeline_mode = #tpu.pipeline_mode<synchronous>, transform_indices = @transform_2, window_bounds = array<i64: 2, 128>}, {transform_indices = @transform_3, window_bounds = array<i64: 1, 256, 256>}, {transform_indices = @transform_4, window_bounds = array<i64: 1, 256, 128>}]} {
    %c0_i32 = arith.constant 0 : i32
    %0 = arith.cmpi eq, %arg1, %c0_i32 : i32
    %1 = arith.extui %0 : i1 to i32
    %c0_i32_0 = arith.constant 0 : i32
    %2 = arith.cmpi ne, %1, %c0_i32_0 : i32
    scf.if %2 {
      %c0_21 = arith.constant 0 : index
      %c0_22 = arith.constant 0 : index
      %c0_23 = arith.constant 0 : index
      %50 = vector.load %arg2[%c0_21, %c0_22, %c0_23] : memref<1x256x64xf32, #tpu.memory_space<vmem>>, vector<1x256x64xf32>
      %51 = vector.shape_cast %50 : vector<1x256x64xf32> to vector<256x64xf32>
      %c0_24 = arith.constant 0 : index
      %c0_25 = arith.constant 0 : index
      %52 = vector.load %arg3[%c0_24, %c0_25] : memref<64x128xf32, #tpu.memory_space<vmem>>, vector<64x128xf32>
      %53 = arith.truncf %51 : vector<256x64xf32> to vector<256x64xbf16>
      %54 = arith.truncf %52 : vector<64x128xf32> to vector<64x128xbf16>
      %cst_26 = arith.constant dense<0.000000e+00> : vector<256x128xf32>
      %55 = tpu.matmul %53, %54, %cst_26 {dimension_numbers = #tpu.dot_dimension_numbers<[1], [0], [0], [1], [0, 0, 1, 1], [], []>} : vector<256x64xbf16>, vector<64x128xbf16>, vector<256x128xf32> -> vector<256x128xf32>
      %c1 = arith.constant 1 : index
      %c0_27 = arith.constant 0 : index
      %56 = vector.load %arg4[%c1, %c0_27] : memref<2x128xf32, #tpu.memory_space<vmem>>, vector<1x128xf32>
      %57 = vector.broadcast %56 : vector<1x128xf32> to vector<256x128xf32>
      %58 = arith.mulf %55, %57 : vector<256x128xf32>
      %cst_28 = arith.constant dense<0.000000e+00> : vector<256xf32>
      %59 = vector.multi_reduction <add>, %58, %cst_28 [1] : vector<256x128xf32> to vector<256xf32>
      %60 = vector.shape_cast %59 : vector<256xf32> to vector<256x1xf32>
      %61 = tpu.transpose %60, [1, 0] : vector<256x1xf32> -> vector<1x256xf32>
      %c0_29 = arith.constant 0 : index
      %c0_30 = arith.constant 0 : index
      %62 = vector.load %arg8[%c0_29, %c0_30] : memref<1x256xf32, #tpu.memory_space<vmem>>, vector<1x256xf32>
      tpu.vector_store %arg8[%c0_29, %c0_30], %61 {strides = array<i32>} : memref<1x256xf32, #tpu.memory_space<vmem>>, vector<1x256xf32>,
      %63 = arith.truncf %55 : vector<256x128xf32> to vector<256x128xbf16>
      %c0_31 = arith.constant 0 : index
      %c0_32 = arith.constant 0 : index
      %64 = vector.load %arg7[%c0_31, %c0_32] : memref<256x128xbf16, #tpu.memory_space<vmem>>, vector<256x128xbf16>
      tpu.vector_store %arg7[%c0_31, %c0_32], %63 {strides = array<i32>} : memref<256x128xbf16, #tpu.memory_space<vmem>>, vector<256x128xbf16>,
    } else {
    }
    %c256_i32 = arith.constant 256 : i32
    %3 = arith.muli %arg1, %c256_i32 : i32
    %4 = tpu.assume_multiple %3, 256 : i32
    %5 = arith.index_cast %4 : i32 to index
    %c0 = arith.constant 0 : index
    %6 = vector.load %arg7[%5, %c0] : memref<256x128xbf16, #tpu.memory_space<vmem>>, vector<256x128xbf16>
    %c0_1 = arith.constant 0 : index
    %c0_2 = arith.constant 0 : index
    %7 = vector.load %arg4[%c0_1, %c0_2] : memref<2x128xf32, #tpu.memory_space<vmem>>, vector<1x128xf32>
    %8 = arith.extf %6 : vector<256x128xbf16> to vector<256x128xf32>
    %9 = vector.broadcast %7 : vector<1x128xf32> to vector<256x128xf32>
    %10 = arith.mulf %8, %9 : vector<256x128xf32>
    %cst = arith.constant dense<0.000000e+00> : vector<256xf32>
    %11 = vector.multi_reduction <add>, %10, %cst [1] : vector<256x128xf32> to vector<256xf32>
    %12 = vector.shape_cast %11 : vector<256xf32> to vector<256x1xf32>
    %c0_3 = arith.constant 0 : index
    %c0_4 = arith.constant 0 : index
    %13 = vector.load %arg8[%c0_3, %c0_4] : memref<1x256xf32, #tpu.memory_space<vmem>>, vector<1x256xf32>
    %14 = vector.broadcast %12 : vector<256x1xf32> to vector<256x256xf32>
    %15 = vector.broadcast %13 : vector<1x256xf32> to vector<256x256xf32>
    %16 = arith.addf %14, %15 : vector<256x256xf32>
    %c0_5 = arith.constant 0 : index
    %c0_6 = arith.constant 0 : index
    %c0_7 = arith.constant 0 : index
    %17 = vector.load %arg5[%c0_5, %c0_6, %c0_7] : memref<1x256x256xi8, #tpu.memory_space<vmem>>, vector<1x256x256xi8>
    %18 = vector.shape_cast %17 : vector<1x256x256xi8> to vector<256x256xi8>
    %c0_i8 = arith.constant 0 : i8
    %19 = vector.broadcast %c0_i8 : i8 to vector<256x256xi8>
    %20 = arith.cmpi ne, %18, %19 : vector<256x256xi8>
    %cst_8 = arith.constant 2.000000e-01 : f32
    %21 = vector.broadcast %cst_8 : f32 to vector<256x256xf32>
    %22 = arith.mulf %21, %16 : vector<256x256xf32>
    %23 = arith.maximumf %16, %22 : vector<256x256xf32>
    %cst_9 = arith.constant -9.000000e+15 : f32
    %24 = vector.broadcast %cst_9 : f32 to vector<256x256xf32>
    %25 = arith.select %20, %23, %24 : vector<256x256xi1>, vector<256x256xf32>
    %cst_10 = arith.constant dense<0xFF800000> : vector<256xf32>
    %26 = vector.multi_reduction <maximumf>, %25, %cst_10 [1] : vector<256x256xf32> to vector<256xf32>
    %27 = vector.shape_cast %26 : vector<256xf32> to vector<256x1xf32>
    %28 = vector.broadcast %27 : vector<256x1xf32> to vector<256x256xf32>
    %29 = arith.subf %25, %28 : vector<256x256xf32>
    %30 = math.exp %29 : vector<256x256xf32>
    %cst_11 = arith.constant dense<0.000000e+00> : vector<256xf32>
    %31 = vector.multi_reduction <add>, %30, %cst_11 [1] : vector<256x256xf32> to vector<256xf32>
    %32 = vector.shape_cast %31 : vector<256xf32> to vector<256x1xf32>
    %33 = tpu.reciprocal %32 {approx = true} : vector<256x1xf32> -> vector<256x1xf32>
    %34 = vector.broadcast %33 : vector<256x1xf32> to vector<256x256xf32>
    %35 = arith.mulf %30, %34 : vector<256x256xf32>
    %c0_12 = arith.constant 0 : index
    %c0_13 = arith.constant 0 : index
    %36 = vector.load %arg7[%c0_12, %c0_13] : memref<256x128xbf16, #tpu.memory_space<vmem>>, vector<256x128xbf16>
    %37 = arith.truncf %35 : vector<256x256xf32> to vector<256x256xbf16>
    %cst_14 = arith.constant dense<0.000000e+00> : vector<256x128xf32>
    %38 = tpu.matmul %37, %36, %cst_14 {dimension_numbers = #tpu.dot_dimension_numbers<[1], [0], [0], [1], [0, 0, 1, 1], [], []>} : vector<256x256xbf16>, vector<256x128xbf16>, vector<256x128xf32> -> vector<256x128xf32>
    %cst_15 = arith.constant 0.000000e+00 : f32
    %39 = vector.broadcast %cst_15 : f32 to vector<256x128xf32>
    %40 = arith.cmpf ogt, %38, %39 : vector<256x128xf32>
    %cst_16 = arith.constant 0.000000e+00 : f32
    %41 = vector.broadcast %cst_16 : f32 to vector<256x128xf32>
    %42 = arith.minimumf %38, %41 : vector<256x128xf32>
    %43 = math.exp %42 : vector<256x128xf32>
    %cst_17 = arith.constant 1.000000e+00 : f32
    %44 = vector.broadcast %cst_17 : f32 to vector<256x128xf32>
    %45 = arith.subf %43, %44 : vector<256x128xf32>
    %46 = arith.select %40, %38, %45 : vector<256x128xi1>, vector<256x128xf32>
    %c0_18 = arith.constant 0 : index
    %c0_19 = arith.constant 0 : index
    %c0_20 = arith.constant 0 : index
    %47 = vector.load %arg6[%c0_18, %c0_19, %c0_20] : memref<1x256x128xf32, #tpu.memory_space<vmem>>, vector<1x256x128xf32>
    %48 = vector.shape_cast %47 : vector<1x256x128xf32> to vector<256x128xf32>
    %49 = vector.shape_cast %46 : vector<256x128xf32> to vector<1x256x128xf32>
    tpu.vector_store %arg6[%c0_18, %c0_19, %c0_20], %49 {strides = array<i32>} : memref<1x256x128xf32, #tpu.memory_space<vmem>>, vector<1x256x128xf32>,
    return
  }
  func.func @transform_0(%arg0: i32, %arg1: i32) -> (i32, i32, i32) {
    %c0_i32 = arith.constant 0 : i32
    %c0_i32_0 = arith.constant 0 : i32
    %c0_i32_1 = arith.constant 0 : i32
    return %arg0, %c0_i32, %c0_i32_0 : i32, i32, i32
  }
  func.func @transform_1(%arg0: i32, %arg1: i32) -> (i32, i32) {
    %c0_i32 = arith.constant 0 : i32
    %c0_i32_0 = arith.constant 0 : i32
    %c0_i32_1 = arith.constant 0 : i32
    return %c0_i32, %c0_i32_0 : i32, i32
  }
  func.func @transform_2(%arg0: i32, %arg1: i32) -> (i32, i32) {
    %c0_i32 = arith.constant 0 : i32
    %c0_i32_0 = arith.constant 0 : i32
    %c0_i32_1 = arith.constant 0 : i32
    return %c0_i32, %c0_i32_0 : i32, i32
  }
  func.func @transform_3(%arg0: i32, %arg1: i32) -> (i32, i32, i32) {
    %c0_i32 = arith.constant 0 : i32
    %c0_i32_0 = arith.constant 0 : i32
    return %arg0, %arg1, %c0_i32 : i32, i32, i32
  }
  func.func @transform_4(%arg0: i32, %arg1: i32) -> (i32, i32, i32) {
    %c0_i32 = arith.constant 0 : i32
    %c0_i32_0 = arith.constant 0 : i32
    return %arg0, %arg1, %c0_i32 : i32, i32, i32
  }
}

</mosaic_0001>

<llo_original>
// kernel: tpu_custom_call.1
$region0: #{tpu_custom_call.1}
  #allocation0 [shape = 'u32[]', space=smem, size = 0x4, offset = 0x4, fixed_abs, tag = 'smem constant byte address 0x4 - core index']
  #allocation1 [shape = 'u32[144,128]{1,0:T(1,128)}', space=vmem, size = 0x12000, scoped, tag = 'internal scratch']
  #allocation2 [shape = 'bf16[256,128]{1,0:T(16,128)(2,1)}', space=vmem, size = 0x10000, scoped, tag = 'scratch operand']
  #allocation3 [shape = 'f32[1,256]{1,0:T(1,128)}', space=vmem, size = 0x400, scoped, tag = 'scratch operand']
  %s0 = inlined_call_operand.vmem [shape: f32[2,256,64], index: 0, kind: input, shape index: {}]
  %s1 = inlined_call_operand.vmem [shape: f32[64,128], index: 1, kind: input, shape index: {}]
  %s2 = inlined_call_operand.vmem [shape: f32[2,128], index: 2, kind: input, shape index: {}]
  %s3 = inlined_call_operand.vmem [shape: s8[2,256,256], index: 3, kind: input, shape index: {}]
  %s4 = inlined_call_operand.hbm [shape: f32[2,256,128], index: 4, kind: output, shape index: {}]
  %s5 = sld [smem:[#allocation0]]
  $region53: #{tpu_custom_call.1} parent=0
    _
  %s7 = ssub.s32 1, %s5
  %s8 = scalar_select 0, %s7, %s5
  $region1: #{tpu_custom_call.1} parent=0
    #allocation4 [shape = 'u8[262144]{0}', space=vmem, size = 0x40000, scoped, tag = 'output window, operand 0']
    #allocation5 [shape = 's32[2]{0}', space=sflag, size = 0x8, scoped, tag = 'scoped memory for tpu_custom_call.1']
    %9 = vsyncpa [#allocation5], 0
    %s10 = scalar_lea.sflag [#allocation5], 1
    %11 = vsyncpa %s10, 0
    loop: start=0, step=1, limit=4
    $region2: #{tpu_custom_call.1} parent=1 // loop_pre_header
      _
    $region3: #{tpu_custom_call.1} parent=1 // loop_header
      %s13 = sphi 0, %s17
      %p14 = scmp.ge.s32.totalorder %s13, 4
      %s20 = sphi 0, %s32
      %s21 = sphi 0, %s28
      %s22 = sphi 0, %s20
      %s23 = sphi 0, %s21
      %s24 = sphi 0, %s22
      %s25 = sphi 0, %s23
      %s35 = sphi 0, %s37
      %s38 = sphi 0, %s35
      %s39 = sphi 0, %s38
      %s55 = sphi 0, %s39
      %s59 = sphi 0, %s59
      %s61 = sphi 0, %s59
      %s62 = sphi 0, %s61
      %s76 = sphi 0, %s62
      %s80 = sphi 0, %s80
      %s82 = sphi 0, %s80
      %s83 = sphi 0, %s82
      %s97 = sphi 0, %s83
      %s105 = sphi 0, %s107
      %s108 = sphi 0, %s105
      %s109 = sphi 0, %s108
      %s125 = sphi 0, %s109
      %s133 = sphi 0, %s135
      %s136 = sphi 0, %s133
      %s137 = sphi 0, %s136
      %s153 = sphi 0, %s137
    $region4: #{tpu_custom_call.1} parent=1 // loop_header_branch
      %16 = sbr.rel (%p14) target = $region8
    $region5: #{tpu_custom_call.1} parent=1 // loop_body
      %s18 = ssub.s32 %s13, 1
      %s19 = ssub.s32 %s13, 2
      %s26 = sadd.s32 1, %s21
      %p27 = scmp.ge.s32.totalorder %s26, 1
      %s28 = scalar_select %p27, 0, %s26
      %s29 = sadd.s32 1, %s20
      %s30 = scalar_select %p27, %s29, %s20
      %p31 = scmp.ge.s32.totalorder %s30, 2
      %s32 = scalar_select %p31, 0, %s30
      %s33 = ssub.s32 %s20, %s32
      %p34 = scmp.eq.s32.totalorder %s33, 0
      %s36 = sadd.s32 %s35, 1
      %s37 = scalar_select %p34, %s35, %s36
      %p40 = pneg %p34
      %p41 = scmp.eq.s32.totalorder %s13, 1
      %p42 = por %p40, %p41
      %p43 = scmp.ne.s32.totalorder %s35, %s38
      %p44 = scmp.eq.s32.totalorder %s13, 0
      %p45 = por %p43, %p44
      %p46 = scmp.ne.s32.totalorder %s35, %s38
      %p47 = scmp.eq.s32.totalorder %s18, 1
      %p48 = por %p46, %p47
      %p49 = scmp.ne.s32.totalorder %s38, %s39
      %p50 = scmp.eq.s32.totalorder %s18, 0
      %p51 = por %p49, %p50
      %p52 = scmp.ne.s32.totalorder %s38, %s39
      %p53 = scmp.eq.s32.totalorder %s19, 1
      %p54 = por %p52, %p53
      %p56 = scmp.ne.s32.totalorder %s39, %s55
      %p57 = scmp.eq.s32.totalorder %s19, 0
      %p58 = por %p56, %p57
      %s60 = sadd.s32 %s59, 1
      %p63 = scmp.eq.s32.totalorder %s13, 1
      %p64 = scmp.ne.s32.totalorder %s59, %s61
      %p65 = scmp.eq.s32.totalorder %s13, 0
      %p66 = por %p64, %p65
      %p67 = scmp.ne.s32.totalorder %s59, %s61
      %p68 = scmp.eq.s32.totalorder %s18, 1
      %p69 = por %p67, %p68
      %p70 = scmp.ne.s32.totalorder %s61, %s62
      %p71 = scmp.eq.s32.totalorder %s18, 0
      %p72 = por %p70, %p71
      %p73 = scmp.ne.s32.totalorder %s61, %s62
      %p74 = scmp.eq.s32.totalorder %s19, 1
      %p75 = por %p73, %p74
      %p77 = scmp.ne.s32.totalorder %s62, %s76
      %p78 = scmp.eq.s32.totalorder %s19, 0
      %p79 = por %p77, %p78
      %s81 = sadd.s32 %s80, 1
      %p84 = scmp.eq.s32.totalorder %s13, 1
      %p85 = scmp.ne.s32.totalorder %s80, %s82
      %p86 = scmp.eq.s32.totalorder %s13, 0
      %p87 = por %p85, %p86
      %p88 = scmp.ne.s32.totalorder %s80, %s82
      %p89 = scmp.eq.s32.totalorder %s18, 1
      %p90 = por %p88, %p89
      %p91 = scmp.ne.s32.totalorder %s82, %s83
      %p92 = scmp.eq.s32.totalorder %s18, 0
      %p93 = por %p91, %p92
      %p94 = scmp.ne.s32.totalorder %s82, %s83
      %p95 = scmp.eq.s32.totalorder %s19, 1
      %p96 = por %p94, %p95
      %p98 = scmp.ne.s32.totalorder %s83, %s97
      %p99 = scmp.eq.s32.totalorder %s19, 0
      %p100 = por %p98, %p99
      %s101 = ssub.s32 %s20, %s32
      %s102 = ssub.s32 %s21, %s28
      %s103 = sor.u32 %s101, %s102
      %p104 = scmp.eq.s32.totalorder %s103, 0
      %s106 = sadd.s32 %s105, 1
      %s107 = scalar_select %p104, %s105, %s106
      %p110 = pneg %p104
      %p111 = scmp.eq.s32.totalorder %s13, 1
      %p112 = por %p110, %p111
      %p113 = scmp.ne.s32.totalorder %s105, %s108
      %p114 = scmp.eq.s32.totalorder %s13, 0
      %p115 = por %p113, %p114
      %p116 = scmp.ne.s32.totalorder %s105, %s108
      %p117 = scmp.eq.s32.totalorder %s18, 1
      %p118 = por %p116, %p117
      %p119 = scmp.ne.s32.totalorder %s108, %s109
      %p120 = scmp.eq.s32.totalorder %s18, 0
      %p121 = por %p119, %p120
      %p122 = scmp.ne.s32.totalorder %s108, %s109
      %p123 = scmp.eq.s32.totalorder %s19, 1
      %p124 = por %p122, %p123
      %p126 = scmp.ne.s32.totalorder %s109, %s125
      %p127 = scmp.eq.s32.totalorder %s19, 0
      %p128 = por %p126, %p127
      %s129 = ssub.s32 %s20, %s32
      %s130 = ssub.s32 %s21, %s28
      %s131 = sor.u32 %s129, %s130
      %p132 = scmp.eq.s32.totalorder %s131, 0
      %s134 = sadd.s32 %s133, 1
      %s135 = scalar_select %p132, %s133, %s134
      %p138 = pneg %p132
      %p139 = scmp.eq.s32.totalorder %s13, 1
      %p140 = por %p138, %p139
      %p141 = scmp.ne.s32.totalorder %s133, %s136
      %p142 = scmp.eq.s32.totalorder %s13, 0
      %p143 = por %p141, %p142
      %p144 = scmp.ne.s32.totalorder %s133, %s136
      %p145 = scmp.eq.s32.totalorder %s18, 1
      %p146 = por %p144, %p145
      %p147 = scmp.ne.s32.totalorder %s136, %s137
      %p148 = scmp.eq.s32.totalorder %s18, 0
      %p149 = por %p147, %p148
      %p150 = scmp.ne.s32.totalorder %s136, %s137
      %p151 = scmp.eq.s32.totalorder %s19, 1
      %p152 = por %p150, %p151
      %p154 = scmp.ne.s32.totalorder %s137, %s153
      %p155 = scmp.eq.s32.totalorder %s19, 0
      %p156 = por %p154, %p155
      %p157 = scmp.le.s32.totalorder 1, %s13
      %p158 = scmp.lt.s32.totalorder %s13, 3
      %p159 = pnand %p157, %p158
      %p160 = pneg %p159
      // Predicated region
      $region9: #{tpu_custom_call.1} parent=5 // pred_check
        _
      $region10: #{tpu_custom_call.1} parent=5 // pred_check_branch
        %162 = sbr.rel (%p159) target = $region12
      $region11: #{tpu_custom_call.1} parent=5 // pred_region
        %s163 = ssub.s32 %s13, 1
        // Predicated region
        $region13: #{tpu_custom_call.1} parent=11 // pred_check
          %p164 = pneg %p72
        $region14: #{tpu_custom_call.1} parent=11 // pred_check_branch
          %166 = sbr.rel (%p164) target = $region16
        $region15: #{tpu_custom_call.1} parent=11 // pred_region
          _
        $region16: #{tpu_custom_call.1} parent=11 // pred_fallthru
          _
        // Predicated region
        $region17: #{tpu_custom_call.1} parent=11 // pred_check
          %p167 = pneg %p93
        $region18: #{tpu_custom_call.1} parent=11 // pred_check_branch
          %169 = sbr.rel (%p167) target = $region20
        $region19: #{tpu_custom_call.1} parent=11 // pred_region
          _
        $region20: #{tpu_custom_call.1} parent=11 // pred_fallthru
          _
      $region12: #{tpu_custom_call.1} parent=5 // pred_fallthru
        _
      %p170 = scmp.lt.s32.totalorder %s13, 2
      // Predicated region
      $region21: #{tpu_custom_call.1} parent=5 // pred_check
        %p171 = pneg %p170
      $region22: #{tpu_custom_call.1} parent=5 // pred_check_branch
        %173 = sbr.rel (%p171) target = $region24
      $region23: #{tpu_custom_call.1} parent=5 // pred_region
        // Predicated region
        $region25: #{tpu_custom_call.1} parent=23 // pred_check
          %p174 = pneg %p45
        $region26: #{tpu_custom_call.1} parent=23 // pred_check_branch
          %176 = sbr.rel (%p174) target = $region28
        $region27: #{tpu_custom_call.1} parent=23 // pred_region
          %p177 = scmp.lt.s32.totalorder %s20, 1
          %s178 = scalar_select %p177, %s20, 1
          %s179 = smul.addr %s178, 32
          %s180 = smul.addr %s179, 8
          %s181 = scalar_lea.vmem %s0, %s180
        $region28: #{tpu_custom_call.1} parent=23 // pred_fallthru
          _
        // Predicated region
        $region29: #{tpu_custom_call.1} parent=23 // pred_check
          %p182 = pneg %p115
        $region30: #{tpu_custom_call.1} parent=23 // pred_check_branch
          %184 = sbr.rel (%p182) target = $region32
        $region31: #{tpu_custom_call.1} parent=23 // pred_region
          %s185 = smul.u32 8, %s21
          %p186 = scmp.lt.s32.totalorder %s20, 1
          %s187 = scalar_select %p186, %s20, 1
          %p188 = scmp.lt.s32.totalorder %s185, 7
          %s189 = scalar_select %p188, %s185, 7
          %s190 = smul.addr %s189, 2
          %s191 = smul.addr %s187, 16
          %s192 = sadd.s32 %s190, %s191
          %s193 = smul.addr %s192, 8
          %s194 = scalar_lea.vmem %s3, %s193
          %s195 = smul.u32 8, %s21
        $region32: #{tpu_custom_call.1} parent=23 // pred_fallthru
          _
      $region24: #{tpu_custom_call.1} parent=5 // pred_fallthru
        _
      %p196 = scmp.le.s32.totalorder 1, %s13
      %p197 = scmp.lt.s32.totalorder %s13, 3
      %p198 = pnand %p196, %p197
      %p199 = pneg %p198
      // Predicated region
      $region33: #{tpu_custom_call.1} parent=5 // pred_check
        _
      $region34: #{tpu_custom_call.1} parent=5 // pred_check_branch
        %201 = sbr.rel (%p198) target = $region36
      $region35: #{tpu_custom_call.1} parent=5 // pred_region
        %s202 = ssub.s32 %s13, 1
        %p203 = scmp.lt.s32.totalorder %s22, 1
        %s204 = scalar_select %p203, %s22, 1
        %s205 = smul.addr %s204, 32
        %s206 = smul.addr %s205, 8
        %s207 = scalar_lea.vmem %s0, %s206
        %p208 = pneg %p51
        %p209 = pneg %p48
        %p210 = pneg %p72
        %p211 = pneg %p69
        %p212 = pneg %p93
        %p213 = pneg %p90
        %s214 = smul.u32 8, %s23
        %p215 = scmp.lt.s32.totalorder %s22, 1
        %s216 = scalar_select %p215, %s22, 1
        %p217 = scmp.lt.s32.totalorder %s214, 7
        %s218 = scalar_select %p217, %s214, 7
        %s219 = smul.addr %s218, 2
        %s220 = smul.addr %s216, 16
        %s221 = sadd.s32 %s219, %s220
        %s222 = smul.addr %s221, 8
        %s223 = scalar_lea.vmem %s3, %s222
        %p224 = pneg %p121
        %p225 = pneg %p118
        %p226 = pneg %p149
        %p227 = pneg %p146
        %s228 = sand.u32 %s136, 1
        %s229 = scalar_lea.sflag [#allocation5], %s228
        %s230 = sand.u32 %s136, 1
        %s231 = smul.addr %s230, 256
        %s232 = scalar_lea.vmem [#allocation4], %s231
        %p233 = scmp.lt.s32.totalorder %s22, 1
        %s234 = scalar_select %p233, %s22, 1
        %s235 = smul.addr %s234, 32
        %s236 = smul.addr %s235, 8
        %s237 = scalar_lea.vmem %s0, %s236
        %s238 = smul.u32 8, %s23
        %p239 = scmp.lt.s32.totalorder %s22, 1
        %s240 = scalar_select %p239, %s22, 1
        %p241 = scmp.lt.s32.totalorder %s238, 7
        %s242 = scalar_select %p241, %s238, 7
        %s243 = smul.addr %s242, 2
        %s244 = smul.addr %s240, 16
        %s245 = sadd.s32 %s243, %s244
        %s246 = smul.addr %s245, 8
        %s247 = scalar_lea.vmem %s3, %s246
        %s248 = smul.u32 8, %s23
        %s249 = smul.u32 32, %s23
        %p253 = scmp.eq.s32.totalorder %s23, 0
        // Predicated region
        $region37: #{tpu_custom_call.1} parent=35 // pred_check
          %p254 = pneg %p253
        $region38: #{tpu_custom_call.1} parent=35 // pred_check_branch
          %256 = sbr.rel (%p254) target = $region40
        $region39: #{tpu_custom_call.1} parent=35 // pred_region
          %v257 = vld [vmem:[%s237] sm:$0xff]
          %v258 = vld [vmem:[%s237 + $0x8] sm:$0xff]
          %v259 = vld [vmem:[%s237 + $0x10] sm:$0xff]
          %v260 = vld [vmem:[%s237 + $0x18] sm:$0xff]
          %v261 = vld [vmem:[%s237 + $0x20] sm:$0xff]
          %v262 = vld [vmem:[%s237 + $0x28] sm:$0xff]
          %v263 = vld [vmem:[%s237 + $0x30] sm:$0xff]
          %v264 = vld [vmem:[%s237 + $0x38] sm:$0xff]
          %v265 = vld [vmem:[%s237 + $0x40] sm:$0xff]
          %v266 = vld [vmem:[%s237 + $0x48] sm:$0xff]
          %v267 = vld [vmem:[%s237 + $0x50] sm:$0xff]
          %v268 = vld [vmem:[%s237 + $0x58] sm:$0xff]
          %v269 = vld [vmem:[%s237 + $0x60] sm:$0xff]
          %v270 = vld [vmem:[%s237 + $0x68] sm:$0xff]
          %v271 = vld [vmem:[%s237 + $0x70] sm:$0xff]
          %v272 = vld [vmem:[%s237 + $0x78] sm:$0xff]
          %v273 = vld [vmem:[%s237 + $0x80] sm:$0xff]
          %v274 = vld [vmem:[%s237 + $0x88] sm:$0xff]
          %v275 = vld [vmem:[%s237 + $0x90] sm:$0xff]
          %v276 = vld [vmem:[%s237 + $0x98] sm:$0xff]
          %v277 = vld [vmem:[%s237 + $0xa0] sm:$0xff]
          %v278 = vld [vmem:[%s237 + $0xa8] sm:$0xff]
          %v279 = vld [vmem:[%s237 + $0xb0] sm:$0xff]
          %v280 = vld [vmem:[%s237 + $0xb8] sm:$0xff]
          %v281 = vld [vmem:[%s237 + $0xc0] sm:$0xff]
          %v282 = vld [vmem:[%s237 + $0xc8] sm:$0xff]
          %v283 = vld [vmem:[%s237 + $0xd0] sm:$0xff]
          %v284 = vld [vmem:[%s237 + $0xd8] sm:$0xff]
          %v285 = vld [vmem:[%s237 + $0xe0] sm:$0xff]
          %v286 = vld [vmem:[%s237 + $0xe8] sm:$0xff]
          %v287 = vld [vmem:[%s237 + $0xf0] sm:$0xff]
          %v288 = vld [vmem:[%s237 + $0xf8] sm:$0xff]
          %v289 = vld [vmem:[%s1] sm:$0xff]
          %v290 = vld [vmem:[%s1 + $0x8] sm:$0xff]
          %v291 = vld [vmem:[%s1 + $0x10] sm:$0xff]
          %v292 = vld [vmem:[%s1 + $0x18] sm:$0xff]
          %v293 = vld [vmem:[%s1 + $0x20] sm:$0xff]
          %v294 = vld [vmem:[%s1 + $0x28] sm:$0xff]
          %v295 = vld [vmem:[%s1 + $0x30] sm:$0xff]
          %v296 = vld [vmem:[%s1 + $0x38] sm:$0xff]
          %v297 = vpack.c.bf16 %v258, %v257
          %v298 = vpack.c.bf16 %v260, %v259
          %v299 = vpack.c.bf16 %v262, %v261
          %v300 = vpack.c.bf16 %v264, %v263
          %v301 = vpack.c.bf16 %v266, %v265
          %v302 = vpack.c.bf16 %v268, %v267
          %v303 = vpack.c.bf16 %v270, %v269
          %v304 = vpack.c.bf16 %v272, %v271
          %v305 = vpack.c.bf16 %v274, %v273
          %v306 = vpack.c.bf16 %v276, %v275
          %v307 = vpack.c.bf16 %v278, %v277
          %v308 = vpack.c.bf16 %v280, %v279
          %v309 = vpack.c.bf16 %v282, %v281
          %v310 = vpack.c.bf16 %v284, %v283
          %v311 = vpack.c.bf16 %v286, %v285
          %v312 = vpack.c.bf16 %v288, %v287
          %v313 = vpack.c.bf16 %v290, %v289
          %v314 = vpack.c.bf16 %v292, %v291
          %v315 = vpack.c.bf16 %v294, %v293
          %v316 = vpack.c.bf16 %v296, %v295
          %vm317 = vcmask 523264
          %v319 = vsel %vm317, %v297, 0
          %v322 = vsel %vm317, %v298, 0
          %v325 = vsel %vm317, %v299, 0
          %v328 = vsel %vm317, %v300, 0
          %v331 = vsel %vm317, %v301, 0
          %v334 = vsel %vm317, %v302, 0
          %v337 = vsel %vm317, %v303, 0
          %v340 = vsel %vm317, %v304, 0
          %v343 = vsel %vm317, %v305, 0
          %v346 = vsel %vm317, %v306, 0
          %v349 = vsel %vm317, %v307, 0
          %v352 = vsel %vm317, %v308, 0
          %v355 = vsel %vm317, %v309, 0
          %v358 = vsel %vm317, %v310, 0
          %v361 = vsel %vm317, %v311, 0
          %v364 = vsel %vm317, %v312, 0
          %366 = vmatprep.subr.bf16.mxu0 0
          %367 = vmatpush1.bf16.msra.mxu0 %v313
          %368 = vmatprep.subr.bf16.mxu0 0
          %369 = vmatpush1.bf16.msra.mxu0 %v314
          %370 = vmatprep.subr.bf16.mxu0 0
          %371 = vmatpush1.bf16.msra.mxu0 %v315
          %372 = vmatprep.subr.bf16.mxu0 0
          %373 = vmatpush1.bf16.msra.mxu0 %v316
          %374 = vmatprep.subr.bf16.mxu0 0
          %375 = vmatpush1.bf16.msra.mxu0 0
          %376 = vmatprep.subr.bf16.mxu0 0
          %377 = vmatpush1.bf16.msra.mxu0 0
          %378 = vmatprep.subr.bf16.mxu0 0
          %379 = vmatpush1.bf16.msra.mxu0 0
          %380 = vmatprep.subr.bf16.mxu0 0
          %381 = vmatpush1.bf16.msra.mxu0 0
          %382 = vmatprep.subr.bf16.mxu0 0
          %383 = vmatpush1.bf16.msra.mxu0 0
          %384 = vmatprep.subr.bf16.mxu0 0
          %385 = vmatpush1.bf16.msra.mxu0 0
          %386 = vmatprep.subr.bf16.mxu0 0
          %387 = vmatpush1.bf16.msra.mxu0 0
          %388 = vmatprep.subr.bf16.mxu0 0
          %389 = vmatpush1.bf16.msra.mxu0 0
          %390 = vmatprep.subr.bf16.mxu0 0
          %391 = vmatpush1.bf16.msra.mxu0 0
          %392 = vmatprep.subr.bf16.mxu0 0
          %393 = vmatpush1.bf16.msra.mxu0 0
          %394 = vmatprep.subr.bf16.mxu0 0
          %395 = vmatpush1.bf16.msra.mxu0 0
          %396 = vmatprep.subr.bf16.mxu0 0
          %397 = vmatpush1.bf16.msra.mxu0 0
          %398 = vmatprep.mubr.bf16.mxu0 0
          %399 = vmatmul.mubr.bf16.gmra.mrb[0].mxu0 %v319
          %v400 = vpop.f32.mrb[0].mxu0
          %v401 = vadd.f32 0.0, %v400
          %v402 = vpop.f32.mrb[0].mxu0
          %v403 = vpop.f32.mrb[0].mxu0
          %v404 = vadd.f32 0.0, %v403
          %v405 = vpop.f32.mrb[0].mxu0
          %406 = vmatprep.mubr.bf16.mxu0 0
          %407 = vmatmul.mubr.bf16.gmra.mrb[0].mxu0 %v322
          %v408 = vpop.f32.mrb[0].mxu0
          %v409 = vadd.f32 0.0, %v408
          %v410 = vpop.f32.mrb[0].mxu0
          %v411 = vpop.f32.mrb[0].mxu0
          %v412 = vadd.f32 0.0, %v411
          %v413 = vpop.f32.mrb[0].mxu0
          %414 = vmatprep.mubr.bf16.mxu0 0
          %415 = vmatmul.mubr.bf16.gmra.mrb[0].mxu0 %v325
          %v416 = vpop.f32.mrb[0].mxu0
          %v417 = vadd.f32 0.0, %v416
          %v418 = vpop.f32.mrb[0].mxu0
          %v419 = vpop.f32.mrb[0].mxu0
          %v420 = vadd.f32 0.0, %v419
          %v421 = vpop.f32.mrb[0].mxu0
          %422 = vmatprep.mubr.bf16.mxu0 0
          %423 = vmatmul.mubr.bf16.gmra.mrb[0].mxu0 %v328
          %v424 = vpop.f32.mrb[0].mxu0
          %v425 = vadd.f32 0.0, %v424
          %v426 = vpop.f32.mrb[0].mxu0
          %v427 = vpop.f32.mrb[0].mxu0
          %v428 = vadd.f32 0.0, %v427
          %v429 = vpop.f32.mrb[0].mxu0
          %430 = vmatprep.mubr.bf16.mxu0 0
          %431 = vmatmul.mubr.bf16.gmra.mrb[0].mxu0 %v331
          %v432 = vpop.f32.mrb[0].mxu0
          %v433 = vadd.f32 0.0, %v432
          %v434 = vpop.f32.mrb[0].mxu0
          %v435 = vpop.f32.mrb[0].mxu0
          %v436 = vadd.f32 0.0, %v435
          %v437 = vpop.f32.mrb[0].mxu0
          %438 = vmatprep.mubr.bf16.mxu0 0
          %439 = vmatmul.mubr.bf16.gmra.mrb[0].mxu0 %v334
          %v440 = vpop.f32.mrb[0].mxu0
          %v441 = vadd.f32 0.0, %v440
          %v442 = vpop.f32.mrb[0].mxu0
          %v443 = vpop.f32.mrb[0].mxu0
          %v444 = vadd.f32 0.0, %v443
          %v445 = vpop.f32.mrb[0].mxu0
          %446 = vmatprep.mubr.bf16.mxu0 0
          %447 = vmatmul.mubr.bf16.gmra.mrb[0].mxu0 %v337
          %v448 = vpop.f32.mrb[0].mxu0
          %v449 = vadd.f32 0.0, %v448
          %v450 = vpop.f32.mrb[0].mxu0
          %v451 = vpop.f32.mrb[0].mxu0
          %v452 = vadd.f32 0.0, %v451
          %v453 = vpop.f32.mrb[0].mxu0
          %454 = vmatprep.mubr.bf16.mxu0 0
          %455 = vmatmul.mubr.bf16.gmra.mrb[0].mxu0 %v340
          %v456 = vpop.f32.mrb[0].mxu0
          %v457 = vadd.f32 0.0, %v456
          %v458 = vpop.f32.mrb[0].mxu0
          %v459 = vpop.f32.mrb[0].mxu0
          %v460 = vadd.f32 0.0, %v459
          %v461 = vpop.f32.mrb[0].mxu0
          %462 = vmatprep.mubr.bf16.mxu0 0
          %463 = vmatmul.mubr.bf16.gmra.mrb[0].mxu0 %v343
          %v464 = vpop.f32.mrb[0].mxu0
          %v465 = vadd.f32 0.0, %v464
          %v466 = vpop.f32.mrb[0].mxu0
          %v467 = vpop.f32.mrb[0].mxu0
          %v468 = vadd.f32 0.0, %v467
          %v469 = vpop.f32.mrb[0].mxu0
          %470 = vmatprep.mubr.bf16.mxu0 0
          %471 = vmatmul.mubr.bf16.gmra.mrb[0].mxu0 %v346
          %v472 = vpop.f32.mrb[0].mxu0
          %v473 = vadd.f32 0.0, %v472
          %v474 = vpop.f32.mrb[0].mxu0
          %v475 = vpop.f32.mrb[0].mxu0
          %v476 = vadd.f32 0.0, %v475
          %v477 = vpop.f32.mrb[0].mxu0
          %478 = vmatprep.mubr.bf16.mxu0 0
          %479 = vmatmul.mubr.bf16.gmra.mrb[0].mxu0 %v349
          %v480 = vpop.f32.mrb[0].mxu0
          %v481 = vadd.f32 0.0, %v480
          %v482 = vpop.f32.mrb[0].mxu0
          %v483 = vpop.f32.mrb[0].mxu0
          %v484 = vadd.f32 0.0, %v483
          %v485 = vpop.f32.mrb[0].mxu0
          %486 = vmatprep.mubr.bf16.mxu0 0
          %487 = vmatmul.mubr.bf16.gmra.mrb[0].mxu0 %v352
          %v488 = vpop.f32.mrb[0].mxu0
          %v489 = vadd.f32 0.0, %v488
          %v490 = vpop.f32.mrb[0].mxu0
          %v491 = vpop.f32.mrb[0].mxu0
          %v492 = vadd.f32 0.0, %v491
          %v493 = vpop.f32.mrb[0].mxu0
          %494 = vmatprep.mubr.bf16.mxu0 0
          %495 = vmatmul.mubr.bf16.gmra.mrb[0].mxu0 %v355
          %v496 = vpop.f32.mrb[0].mxu0
          %v497 = vadd.f32 0.0, %v496
          %v498 = vpop.f32.mrb[0].mxu0
          %v499 = vpop.f32.mrb[0].mxu0
          %v500 = vadd.f32 0.0, %v499
          %v501 = vpop.f32.mrb[0].mxu0
          %502 = vmatprep.mubr.bf16.mxu0 0
          %503 = vmatmul.mubr.bf16.gmra.mrb[0].mxu0 %v358
          %v504 = vpop.f32.mrb[0].mxu0
          %v505 = vadd.f32 0.0, %v504
          %v506 = vpop.f32.mrb[0].mxu0
          %v507 = vpop.f32.mrb[0].mxu0
          %v508 = vadd.f32 0.0, %v507
          %v509 = vpop.f32.mrb[0].mxu0
          %510 = vmatprep.mubr.bf16.mxu0 0
          %511 = vmatmul.mubr.bf16.gmra.mrb[0].mxu0 %v361
          %v512 = vpop.f32.mrb[0].mxu0
          %v513 = vadd.f32 0.0, %v512
          %v514 = vpop.f32.mrb[0].mxu0
          %v515 = vpop.f32.mrb[0].mxu0
          %v516 = vadd.f32 0.0, %v515
          %v517 = vpop.f32.mrb[0].mxu0
          %518 = vmatprep.mubr.bf16.mxu0 0
          %519 = vmatmul.mubr.bf16.gmra.mrb[0].mxu0 %v364
          %v520 = vpop.f32.mrb[0].mxu0
          %v521 = vadd.f32 0.0, %v520
          %v522 = vpop.f32.mrb[0].mxu0
          %v523 = vpop.f32.mrb[0].mxu0
          %v524 = vadd.f32 0.0, %v523
          %v525 = vpop.f32.mrb[0].mxu0
          %526 = vdwg.mxu0
          %v527 = vld [vmem:[%s2 + $0x1] sm:$0x1]
          %v528 = vlaneseq
          %v529 = vshrl.u32 %v528, 7
          %v530 = vsub.s32 0, %v529
          %v531 = vrot.slane %v527, %v530
          %v532 = vmul.f32 %v401, %v531
          %v533 = vmul.f32 %v404, %v531
          %v534 = vmul.f32 %v409, %v531
          %v535 = vmul.f32 %v412, %v531
          %v536 = vmul.f32 %v417, %v531
          %v537 = vmul.f32 %v420, %v531
          %v538 = vmul.f32 %v425, %v531
          %v539 = vmul.f32 %v428, %v531
          %v540 = vmul.f32 %v433, %v531
          %v541 = vmul.f32 %v436, %v531
          %v542 = vmul.f32 %v441, %v531
          %v543 = vmul.f32 %v444, %v531
          %v544 = vmul.f32 %v449, %v531
          %v545 = vmul.f32 %v452, %v531
          %v546 = vmul.f32 %v457, %v531
          %v547 = vmul.f32 %v460, %v531
          %v548 = vmul.f32 %v465, %v531
          %v549 = vmul.f32 %v468, %v531
          %v550 = vmul.f32 %v473, %v531
          %v551 = vmul.f32 %v476, %v531
          %v552 = vmul.f32 %v481, %v531
          %v553 = vmul.f32 %v484, %v531
          %v554 = vmul.f32 %v489, %v531
          %v555 = vmul.f32 %v492, %v531
          %v556 = vmul.f32 %v497, %v531
          %v557 = vmul.f32 %v500, %v531
          %v558 = vmul.f32 %v505, %v531
          %v559 = vmul.f32 %v508, %v531
          %v560 = vmul.f32 %v513, %v531
          %v561 = vmul.f32 %v516, %v531
          %v562 = vmul.f32 %v521, %v531
          %v563 = vmul.f32 %v524, %v531
          %564 = vadd.xlane.f32.xlu0 %v532
          %v565 = vpop.xlane.xlu0 %564
          %566 = vadd.xlane.f32.xlu0 %v533
          %v567 = vpop.xlane.xlu0 %566
          %568 = vadd.xlane.f32.xlu0 %v534
          %v569 = vpop.xlane.xlu0 %568
          %570 = vadd.xlane.f32.xlu0 %v535
          %v571 = vpop.xlane.xlu0 %570
          %572 = vadd.xlane.f32.xlu0 %v536
          %v573 = vpop.xlane.xlu0 %572
          %574 = vadd.xlane.f32.xlu0 %v537
          %v575 = vpop.xlane.xlu0 %574
          %576 = vadd.xlane.f32.xlu0 %v538
          %v577 = vpop.xlane.xlu0 %576
          %578 = vadd.xlane.f32.xlu0 %v539
          %v579 = vpop.xlane.xlu0 %578
          %580 = vadd.xlane.f32.xlu0 %v540
          %v581 = vpop.xlane.xlu0 %580
          %582 = vadd.xlane.f32.xlu0 %v541
          %v583 = vpop.xlane.xlu0 %582
          %584 = vadd.xlane.f32.xlu0 %v542
          %v585 = vpop.xlane.xlu0 %584
          %586 = vadd.xlane.f32.xlu0 %v543
          %v587 = vpop.xlane.xlu0 %586
          %588 = vadd.xlane.f32.xlu0 %v544
          %v589 = vpop.xlane.xlu0 %588
          %590 = vadd.xlane.f32.xlu0 %v545
          %v591 = vpop.xlane.xlu0 %590
          %592 = vadd.xlane.f32.xlu0 %v546
          %v593 = vpop.xlane.xlu0 %592
          %594 = vadd.xlane.f32.xlu0 %v547
          %v595 = vpop.xlane.xlu0 %594
          %596 = vadd.xlane.f32.xlu0 %v548
          %v597 = vpop.xlane.xlu0 %596
          %598 = vadd.xlane.f32.xlu0 %v549
          %v599 = vpop.xlane.xlu0 %598
          %600 = vadd.xlane.f32.xlu0 %v550
          %v601 = vpop.xlane.xlu0 %600
          %602 = vadd.xlane.f32.xlu0 %v551
          %v603 = vpop.xlane.xlu0 %602
          %604 = vadd.xlane.f32.xlu0 %v552
          %v605 = vpop.xlane.xlu0 %604
          %606 = vadd.xlane.f32.xlu0 %v553
          %v607 = vpop.xlane.xlu0 %606
          %608 = vadd.xlane.f32.xlu0 %v554
          %v609 = vpop.xlane.xlu0 %608
          %610 = vadd.xlane.f32.xlu0 %v555
          %v611 = vpop.xlane.xlu0 %610
          %612 = vadd.xlane.f32.xlu0 %v556
          %v613 = vpop.xlane.xlu0 %612
          %614 = vadd.xlane.f32.xlu0 %v557
          %v615 = vpop.xlane.xlu0 %614
          %616 = vadd.xlane.f32.xlu0 %v558
          %v617 = vpop.xlane.xlu0 %616
          %618 = vadd.xlane.f32.xlu0 %v559
          %v619 = vpop.xlane.xlu0 %618
          %620 = vadd.xlane.f32.xlu0 %v560
          %v621 = vpop.xlane.xlu0 %620
          %622 = vadd.xlane.f32.xlu0 %v561
          %v623 = vpop.xlane.xlu0 %622
          %624 = vadd.xlane.f32.xlu0 %v562
          %v625 = vpop.xlane.xlu0 %624
          %626 = vadd.xlane.f32.xlu0 %v563
          %v627 = vpop.xlane.xlu0 %626
          %628 = vxpose.xlu0.b32.start [1/16] %v565, 128
          %629 = vxpose.xlu0.b32.cont [2/16] %v567, 128
          %630 = vxpose.xlu0.b32.cont [3/16] %v569, 128
          %631 = vxpose.xlu0.b32.cont [4/16] %v571, 128
          %632 = vxpose.xlu0.b32.cont [5/16] %v573, 128
          %633 = vxpose.xlu0.b32.cont [6/16] %v575, 128
          %634 = vxpose.xlu0.b32.cont [7/16] %v577, 128
          %635 = vxpose.xlu0.b32.cont [8/16] %v579, 128
          %636 = vxpose.xlu0.b32.cont [9/16] %v581, 128
          %637 = vxpose.xlu0.b32.cont [10/16] %v583, 128
          %638 = vxpose.xlu0.b32.cont [11/16] %v585, 128
          %639 = vxpose.xlu0.b32.cont [12/16] %v587, 128
          %640 = vxpose.xlu0.b32.cont [13/16] %v589, 128
          %641 = vxpose.xlu0.b32.cont [14/16] %v591, 128
          %642 = vxpose.xlu0.b32.cont [15/16] %v593, 128
          %643 = vxpose.xlu0.b32.end [16/16] %v595, 128
          %v644 = vpop.trf.xlu0
          %v645 = vpop.trf.xlu0
          %v646 = vpop.trf.xlu0
          %v647 = vpop.trf.xlu0
          %v648 = vpop.trf.xlu0
          %v649 = vpop.trf.xlu0
          %v650 = vpop.trf.xlu0
          %v651 = vpop.trf.xlu0
          %v652 = vpop.trf.xlu0
          %v653 = vpop.trf.xlu0
          %v654 = vpop.trf.xlu0
          %v655 = vpop.trf.xlu0
          %v656 = vpop.trf.xlu0
          %v657 = vpop.trf.xlu0
          %v658 = vpop.trf.xlu0
          %v659 = vpop.trf.xlu0
          %660 = vxpose.xlu0.b32.start [1/16] %v597, 128
          %661 = vxpose.xlu0.b32.cont [2/16] %v599, 128
          %662 = vxpose.xlu0.b32.cont [3/16] %v601, 128
          %663 = vxpose.xlu0.b32.cont [4/16] %v603, 128
          %664 = vxpose.xlu0.b32.cont [5/16] %v605, 128
          %665 = vxpose.xlu0.b32.cont [6/16] %v607, 128
          %666 = vxpose.xlu0.b32.cont [7/16] %v609, 128
          %667 = vxpose.xlu0.b32.cont [8/16] %v611, 128
          %668 = vxpose.xlu0.b32.cont [9/16] %v613, 128
          %669 = vxpose.xlu0.b32.cont [10/16] %v615, 128
          %670 = vxpose.xlu0.b32.cont [11/16] %v617, 128
          %671 = vxpose.xlu0.b32.cont [12/16] %v619, 128
          %672 = vxpose.xlu0.b32.cont [13/16] %v621, 128
          %673 = vxpose.xlu0.b32.cont [14/16] %v623, 128
          %674 = vxpose.xlu0.b32.cont [15/16] %v625, 128
          %675 = vxpose.xlu0.b32.end [16/16] %v627, 128
          %v676 = vpop.trf.xlu0
          %v677 = vpop.trf.xlu0
          %v678 = vpop.trf.xlu0
          %v679 = vpop.trf.xlu0
          %v680 = vpop.trf.xlu0
          %v681 = vpop.trf.xlu0
          %v682 = vpop.trf.xlu0
          %v683 = vpop.trf.xlu0
          %v684 = vpop.trf.xlu0
          %v685 = vpop.trf.xlu0
          %v686 = vpop.trf.xlu0
          %v687 = vpop.trf.xlu0
          %v688 = vpop.trf.xlu0
          %v689 = vpop.trf.xlu0
          %v690 = vpop.trf.xlu0
          %v691 = vpop.trf.xlu0
          %v694 = vcombine.low %v644, %v676
          %v696 = vunpack.c.l.s4 1966171168
          %v697 = vunpack.c.0.s8 %v696
          %v698 = vlaneseq
          %v699 = vshrl.u32 %v698, 7
          %v700 = vsub.s32 %v697, %v699
          %v701 = vrot.slane %v694, %v700
          %v703 = vunpack.c.l.s4 1966171168
          %v704 = vunpack.c.0.s8 %v703
          %v705 = vlaneseq
          %v706 = vshrl.u32 %v705, 7
          %v707 = vsub.s32 %v704, %v706
          %v708 = vrot.slane %v701, %v707
          %v710 = vlaneseq
          %vm711 = vcmp.ge.s32.totalorder %v710, 0
          %vm712 = vcmp.lt.s32.totalorder %v710, 256
          %vm713 = vmand %vm711, %vm712
          %714 = vst.msk [vmem:[#allocation3] sm:$0x3] %vm713, %v708
          %v715 = vpack.c.bf16 %v404, %v401
          %v716 = vpack.c.bf16 %v412, %v409
          %v717 = vpack.c.bf16 %v420, %v417
          %v718 = vpack.c.bf16 %v428, %v425
          %v719 = vpack.c.bf16 %v436, %v433
          %v720 = vpack.c.bf16 %v444, %v441
          %v721 = vpack.c.bf16 %v452, %v449
          %v722 = vpack.c.bf16 %v460, %v457
          %v723 = vpack.c.bf16 %v468, %v465
          %v724 = vpack.c.bf16 %v476, %v473
          %v725 = vpack.c.bf16 %v484, %v481
          %v726 = vpack.c.bf16 %v492, %v489
          %v727 = vpack.c.bf16 %v500, %v497
          %v728 = vpack.c.bf16 %v508, %v505
          %v729 = vpack.c.bf16 %v516, %v513
          %v730 = vpack.c.bf16 %v524, %v521
          %731 = vst [vmem:[#allocation2] sm:$0xff] %v715
          %732 = vst [vmem:[#allocation2 + $0x8] sm:$0xff] %v716
          %733 = vst [vmem:[#allocation2 + $0x10] sm:$0xff] %v717
          %734 = vst [vmem:[#allocation2 + $0x18] sm:$0xff] %v718
          %735 = vst [vmem:[#allocation2 + $0x20] sm:$0xff] %v719
          %736 = vst [vmem:[#allocation2 + $0x28] sm:$0xff] %v720
          %737 = vst [vmem:[#allocation2 + $0x30] sm:$0xff] %v721
          %738 = vst [vmem:[#allocation2 + $0x38] sm:$0xff] %v722
          %739 = vst [vmem:[#allocation2 + $0x40] sm:$0xff] %v723
          %740 = vst [vmem:[#allocation2 + $0x48] sm:$0xff] %v724
          %741 = vst [vmem:[#allocation2 + $0x50] sm:$0xff] %v725
          %742 = vst [vmem:[#allocation2 + $0x58] sm:$0xff] %v726
          %743 = vst [vmem:[#allocation2 + $0x60] sm:$0xff] %v727
          %744 = vst [vmem:[#allocation2 + $0x68] sm:$0xff] %v728
          %745 = vst [vmem:[#allocation2 + $0x70] sm:$0xff] %v729
          %746 = vst [vmem:[#allocation2 + $0x78] sm:$0xff] %v730
        $region40: #{tpu_custom_call.1} parent=35 // pred_fallthru
          _
        %s747 = smul.u32 %s23, 256
        %s748 = sshra.s32 %s747, 4
        %s749 = sand.u32 %s747, 15
        %s750 = smul.addr %s748, 8
        %s751 = scalar_lea.vmem [#allocation2], %s750
        %v752 = vld [vmem:[%s751] sm:$0xff]
        %v753 = vld [vmem:[%s751 + $0x8] sm:$0xff]
        %v754 = vld [vmem:[%s751 + $0x10] sm:$0xff]
        %v755 = vld [vmem:[%s751 + $0x18] sm:$0xff]
        %v756 = vld [vmem:[%s751 + $0x20] sm:$0xff]
        %v757 = vld [vmem:[%s751 + $0x28] sm:$0xff]
        %v758 = vld [vmem:[%s751 + $0x30] sm:$0xff]
        %v759 = vld [vmem:[%s751 + $0x38] sm:$0xff]
        %v760 = vld [vmem:[%s751 + $0x40] sm:$0xff]
        %v761 = vld [vmem:[%s751 + $0x48] sm:$0xff]
        %v762 = vld [vmem:[%s751 + $0x50] sm:$0xff]
        %v763 = vld [vmem:[%s751 + $0x58] sm:$0xff]
        %v764 = vld [vmem:[%s751 + $0x60] sm:$0xff]
        %v765 = vld [vmem:[%s751 + $0x68] sm:$0xff]
        %v766 = vld [vmem:[%s751 + $0x70] sm:$0xff]
        %v767 = vld [vmem:[%s751 + $0x78] sm:$0xff]
        %v768 = vld [vmem:[%s2] sm:$0x1]
        %v769 = vunpack.c.l.bf16 %v752
        %v770 = vunpack.c.h.bf16 %v752
        %v771 = vunpack.c.l.bf16 %v753
        %v772 = vunpack.c.h.bf16 %v753
        %v773 = vunpack.c.l.bf16 %v754
        %v774 = vunpack.c.h.bf16 %v754
        %v775 = vunpack.c.l.bf16 %v755
        %v776 = vunpack.c.h.bf16 %v755
        %v777 = vunpack.c.l.bf16 %v756
        %v778 = vunpack.c.h.bf16 %v756
        %v779 = vunpack.c.l.bf16 %v757
        %v780 = vunpack.c.h.bf16 %v757
        %v781 = vunpack.c.l.bf16 %v758
        %v782 = vunpack.c.h.bf16 %v758
        %v783 = vunpack.c.l.bf16 %v759
        %v784 = vunpack.c.h.bf16 %v759
        %v785 = vunpack.c.l.bf16 %v760
        %v786 = vunpack.c.h.bf16 %v760
        %v787 = vunpack.c.l.bf16 %v761
        %v788 = vunpack.c.h.bf16 %v761
        %v789 = vunpack.c.l.bf16 %v762
        %v790 = vunpack.c.h.bf16 %v762
        %v791 = vunpack.c.l.bf16 %v763
        %v792 = vunpack.c.h.bf16 %v763
        %v793 = vunpack.c.l.bf16 %v764
        %v794 = vunpack.c.h.bf16 %v764
        %v795 = vunpack.c.l.bf16 %v765
        %v796 = vunpack.c.h.bf16 %v765
        %v797 = vunpack.c.l.bf16 %v766
        %v798 = vunpack.c.h.bf16 %v766
        %v799 = vunpack.c.l.bf16 %v767
        %v800 = vunpack.c.h.bf16 %v767
        %v801 = vlaneseq
        %v802 = vshrl.u32 %v801, 7
        %v803 = vsub.s32 0, %v802
        %v804 = vrot.slane %v768, %v803
        %v805 = vmul.f32 %v769, %v804
        %v806 = vmul.f32 %v770, %v804
        %v807 = vmul.f32 %v771, %v804
        %v808 = vmul.f32 %v772, %v804
        %v809 = vmul.f32 %v773, %v804
        %v810 = vmul.f32 %v774, %v804
        %v811 = vmul.f32 %v775, %v804
        %v812 = vmul.f32 %v776, %v804
        %v813 = vmul.f32 %v777, %v804
        %v814 = vmul.f32 %v778, %v804
        %v815 = vmul.f32 %v779, %v804
        %v816 = vmul.f32 %v780, %v804
        %v817 = vmul.f32 %v781, %v804
        %v818 = vmul.f32 %v782, %v804
        %v819 = vmul.f32 %v783, %v804
        %v820 = vmul.f32 %v784, %v804
        %v821 = vmul.f32 %v785, %v804
        %v822 = vmul.f32 %v786, %v804
        %v823 = vmul.f32 %v787, %v804
        %v824 = vmul.f32 %v788, %v804
        %v825 = vmul.f32 %v789, %v804
        %v826 = vmul.f32 %v790, %v804
        %v827 = vmul.f32 %v791, %v804
        %v828 = vmul.f32 %v792, %v804
        %v829 = vmul.f32 %v793, %v804
        %v830 = vmul.f32 %v794, %v804
        %v831 = vmul.f32 %v795, %v804
        %v832 = vmul.f32 %v796, %v804
        %v833 = vmul.f32 %v797, %v804
        %v834 = vmul.f32 %v798, %v804
        %v835 = vmul.f32 %v799, %v804
        %v836 = vmul.f32 %v800, %v804
        %837 = vadd.xlane.f32.xlu0 %v805
        %v838 = vpop.xlane.xlu0 %837
        %839 = vadd.xlane.f32.xlu0 %v806
        %v840 = vpop.xlane.xlu0 %839
        %841 = vadd.xlane.f32.xlu0 %v807
        %v842 = vpop.xlane.xlu0 %841
        %843 = vadd.xlane.f32.xlu0 %v808
        %v844 = vpop.xlane.xlu0 %843
        %845 = vadd.xlane.f32.xlu0 %v809
        %v846 = vpop.xlane.xlu0 %845
        %847 = vadd.xlane.f32.xlu0 %v810
        %v848 = vpop.xlane.xlu0 %847
        %849 = vadd.xlane.f32.xlu0 %v811
        %v850 = vpop.xlane.xlu0 %849
        %851 = vadd.xlane.f32.xlu0 %v812
        %v852 = vpop.xlane.xlu0 %851
        %853 = vadd.xlane.f32.xlu0 %v813
        %v854 = vpop.xlane.xlu0 %853
        %855 = vadd.xlane.f32.xlu0 %v814
        %v856 = vpop.xlane.xlu0 %855
        %857 = vadd.xlane.f32.xlu0 %v815
        %v858 = vpop.xlane.xlu0 %857
        %859 = vadd.xlane.f32.xlu0 %v816
        %v860 = vpop.xlane.xlu0 %859
        %861 = vadd.xlane.f32.xlu0 %v817
        %v862 = vpop.xlane.xlu0 %861
        %863 = vadd.xlane.f32.xlu0 %v818
        %v864 = vpop.xlane.xlu0 %863
        %865 = vadd.xlane.f32.xlu0 %v819
        %v866 = vpop.xlane.xlu0 %865
        %867 = vadd.xlane.f32.xlu0 %v820
        %v868 = vpop.xlane.xlu0 %867
        %869 = vadd.xlane.f32.xlu0 %v821
        %v870 = vpop.xlane.xlu0 %869
        %871 = vadd.xlane.f32.xlu0 %v822
        %v872 = vpop.xlane.xlu0 %871
        %873 = vadd.xlane.f32.xlu0 %v823
        %v874 = vpop.xlane.xlu0 %873
        %875 = vadd.xlane.f32.xlu0 %v824
        %v876 = vpop.xlane.xlu0 %875
        %877 = vadd.xlane.f32.xlu0 %v825
        %v878 = vpop.xlane.xlu0 %877
        %879 = vadd.xlane.f32.xlu0 %v826
        %v880 = vpop.xlane.xlu0 %879
        %881 = vadd.xlane.f32.xlu0 %v827
        %v882 = vpop.xlane.xlu0 %881
        %883 = vadd.xlane.f32.xlu0 %v828
        %v884 = vpop.xlane.xlu0 %883
        %885 = vadd.xlane.f32.xlu0 %v829
        %v886 = vpop.xlane.xlu0 %885
        %887 = vadd.xlane.f32.xlu0 %v830
        %v888 = vpop.xlane.xlu0 %887
        %889 = vadd.xlane.f32.xlu0 %v831
        %v890 = vpop.xlane.xlu0 %889
        %891 = vadd.xlane.f32.xlu0 %v832
        %v892 = vpop.xlane.xlu0 %891
        %893 = vadd.xlane.f32.xlu0 %v833
        %v894 = vpop.xlane.xlu0 %893
        %895 = vadd.xlane.f32.xlu0 %v834
        %v896 = vpop.xlane.xlu0 %895
        %897 = vadd.xlane.f32.xlu0 %v835
        %v898 = vpop.xlane.xlu0 %897
        %899 = vadd.xlane.f32.xlu0 %v836
        %v900 = vpop.xlane.xlu0 %899
        %v901 = vld [vmem:[#allocation3] sm:$0x3]
        %v903 = vlaneseq
        %v904 = vshrl.u32 %v903, 7
        %v905 = vsub.s32 0, %v904
        %v906 = vrot.slane %v901, %v905
        %v907 = vlaneseq
        %v908 = vshrl.u32 %v907, 7
        %v909 = vsub.s32 1, %v908
        %v910 = vrot.slane %v901, %v909
        %v913 = vadd.f32 %v838, %v906
        %v914 = vadd.f32 %v838, %v910
        %v915 = vadd.f32 %v840, %v906
        %v916 = vadd.f32 %v840, %v910
        %v917 = vadd.f32 %v842, %v906
        %v918 = vadd.f32 %v842, %v910
        %v919 = vadd.f32 %v844, %v906
        %v920 = vadd.f32 %v844, %v910
        %v921 = vadd.f32 %v846, %v906
        %v922 = vadd.f32 %v846, %v910
        %v923 = vadd.f32 %v848, %v906
        %v924 = vadd.f32 %v848, %v910
        %v925 = vadd.f32 %v850, %v906
        %v926 = vadd.f32 %v850, %v910
        %v927 = vadd.f32 %v852, %v906
        %v928 = vadd.f32 %v852, %v910
        %v929 = vadd.f32 %v854, %v906
        %v930 = vadd.f32 %v854, %v910
        %v931 = vadd.f32 %v856, %v906
        %v932 = vadd.f32 %v856, %v910
        %v933 = vadd.f32 %v858, %v906
        %v934 = vadd.f32 %v858, %v910
        %v935 = vadd.f32 %v860, %v906
        %v936 = vadd.f32 %v860, %v910
        %v937 = vadd.f32 %v862, %v906
        %v938 = vadd.f32 %v862, %v910
        %v939 = vadd.f32 %v864, %v906
        %v940 = vadd.f32 %v864, %v910
        %v941 = vadd.f32 %v866, %v906
        %v942 = vadd.f32 %v866, %v910
        %v943 = vadd.f32 %v868, %v906
        %v944 = vadd.f32 %v868, %v910
        %v945 = vadd.f32 %v870, %v906
        %v946 = vadd.f32 %v870, %v910
        %v947 = vadd.f32 %v872, %v906
        %v948 = vadd.f32 %v872, %v910
        %v949 = vadd.f32 %v874, %v906
        %v950 = vadd.f32 %v874, %v910
        %v951 = vadd.f32 %v876, %v906
        %v952 = vadd.f32 %v876, %v910
        %v953 = vadd.f32 %v878, %v906
        %v954 = vadd.f32 %v878, %v910
        %v955 = vadd.f32 %v880, %v906
        %v956 = vadd.f32 %v880, %v910
        %v957 = vadd.f32 %v882, %v906
        %v958 = vadd.f32 %v882, %v910
        %v959 = vadd.f32 %v884, %v906
        %v960 = vadd.f32 %v884, %v910
        %v961 = vadd.f32 %v886, %v906
        %v962 = vadd.f32 %v886, %v910
        %v963 = vadd.f32 %v888, %v906
        %v964 = vadd.f32 %v888, %v910
        %v965 = vadd.f32 %v890, %v906
        %v966 = vadd.f32 %v890, %v910
        %v967 = vadd.f32 %v892, %v906
        %v968 = vadd.f32 %v892, %v910
        %v969 = vadd.f32 %v894, %v906
        %v970 = vadd.f32 %v894, %v910
        %v971 = vadd.f32 %v896, %v906
        %v972 = vadd.f32 %v896, %v910
        %v973 = vadd.f32 %v898, %v906
        %v974 = vadd.f32 %v898, %v910
        %v975 = vadd.f32 %v900, %v906
        %v976 = vadd.f32 %v900, %v910
        %v977 = vld [vmem:[%s247] sm:$0xff]
        %v978 = vld [vmem:[%s247 + $0x8] sm:$0xff]
        %v979 = vld [vmem:[%s247 + $0x10] sm:$0xff]
        %v980 = vld [vmem:[%s247 + $0x18] sm:$0xff]
        %v981 = vld [vmem:[%s247 + $0x20] sm:$0xff]
        %v982 = vld [vmem:[%s247 + $0x28] sm:$0xff]
        %v983 = vld [vmem:[%s247 + $0x30] sm:$0xff]
        %v984 = vld [vmem:[%s247 + $0x38] sm:$0xff]
        %v985 = vld [vmem:[%s247 + $0x40] sm:$0xff]
        %v986 = vld [vmem:[%s247 + $0x48] sm:$0xff]
        %v987 = vld [vmem:[%s247 + $0x50] sm:$0xff]
        %v988 = vld [vmem:[%s247 + $0x58] sm:$0xff]
        %v989 = vld [vmem:[%s247 + $0x60] sm:$0xff]
        %v990 = vld [vmem:[%s247 + $0x68] sm:$0xff]
        %v991 = vld [vmem:[%s247 + $0x70] sm:$0xff]
        %v992 = vld [vmem:[%s247 + $0x78] sm:$0xff]
        %vm993 = vnez %v977
        %vm994 = vnez %v978
        %vm995 = vnez %v979
        %vm996 = vnez %v980
        %vm997 = vnez %v981
        %vm998 = vnez %v982
        %vm999 = vnez %v983
        %vm1000 = vnez %v984
        %vm1001 = vnez %v985
        %vm1002 = vnez %v986
        %vm1003 = vnez %v987
        %vm1004 = vnez %v988
        %vm1005 = vnez %v989
        %vm1006 = vnez %v990
        %vm1007 = vnez %v991
        %vm1008 = vnez %v992
        %v1009 = vmul.f32 %v913, 0.2
        %v1010 = vmul.f32 %v914, 0.2
        %v1011 = vmul.f32 %v915, 0.2
        %v1012 = vmul.f32 %v916, 0.2
        %v1013 = vmul.f32 %v917, 0.2
        %v1014 = vmul.f32 %v918, 0.2
        %v1015 = vmul.f32 %v919, 0.2
        %v1016 = vmul.f32 %v920, 0.2
        %v1017 = vmul.f32 %v921, 0.2
        %v1018 = vmul.f32 %v922, 0.2
        %v1019 = vmul.f32 %v923, 0.2
        %v1020 = vmul.f32 %v924, 0.2
        %v1021 = vmul.f32 %v925, 0.2
        %v1022 = vmul.f32 %v926, 0.2
        %v1023 = vmul.f32 %v927, 0.2
        %v1024 = vmul.f32 %v928, 0.2
        %v1025 = vmul.f32 %v929, 0.2
        %v1026 = vmul.f32 %v930, 0.2
        %v1027 = vmul.f32 %v931, 0.2
        %v1028 = vmul.f32 %v932, 0.2
        %v1029 = vmul.f32 %v933, 0.2
        %v1030 = vmul.f32 %v934, 0.2
        %v1031 = vmul.f32 %v935, 0.2
        %v1032 = vmul.f32 %v936, 0.2
        %v1033 = vmul.f32 %v937, 0.2
        %v1034 = vmul.f32 %v938, 0.2
        %v1035 = vmul.f32 %v939, 0.2
        %v1036 = vmul.f32 %v940, 0.2
        %v1037 = vmul.f32 %v941, 0.2
        %v1038 = vmul.f32 %v942, 0.2
        %v1039 = vmul.f32 %v943, 0.2
        %v1040 = vmul.f32 %v944, 0.2
        %v1041 = vmul.f32 %v945, 0.2
        %v1042 = vmul.f32 %v946, 0.2
        %v1043 = vmul.f32 %v947, 0.2
        %v1044 = vmul.f32 %v948, 0.2
        %v1045 = vmul.f32 %v949, 0.2
        %v1046 = vmul.f32 %v950, 0.2
        %v1047 = vmul.f32 %v951, 0.2
        %v1048 = vmul.f32 %v952, 0.2
        %v1049 = vmul.f32 %v953, 0.2
        %v1050 = vmul.f32 %v954, 0.2
        %v1051 = vmul.f32 %v955, 0.2
        %v1052 = vmul.f32 %v956, 0.2
        %v1053 = vmul.f32 %v957, 0.2
        %v1054 = vmul.f32 %v958, 0.2
        %v1055 = vmul.f32 %v959, 0.2
        %v1056 = vmul.f32 %v960, 0.2
        %v1057 = vmul.f32 %v961, 0.2
        %v1058 = vmul.f32 %v962, 0.2
        %v1059 = vmul.f32 %v963, 0.2
        %v1060 = vmul.f32 %v964, 0.2
        %v1061 = vmul.f32 %v965, 0.2
        %v1062 = vmul.f32 %v966, 0.2
        %v1063 = vmul.f32 %v967, 0.2
        %v1064 = vmul.f32 %v968, 0.2
        %v1065 = vmul.f32 %v969, 0.2
        %v1066 = vmul.f32 %v970, 0.2
        %v1067 = vmul.f32 %v971, 0.2
        %v1068 = vmul.f32 %v972, 0.2
        %v1069 = vmul.f32 %v973, 0.2
        %v1070 = vmul.f32 %v974, 0.2
        %v1071 = vmul.f32 %v975, 0.2
        %v1072 = vmul.f32 %v976, 0.2
        %v1073 = vmax.f32 %v913, %v1009
        %v1074 = vmax.f32 %v914, %v1010
        %v1075 = vmax.f32 %v915, %v1011
        %v1076 = vmax.f32 %v916, %v1012
        %v1077 = vmax.f32 %v917, %v1013
        %v1078 = vmax.f32 %v918, %v1014
        %v1079 = vmax.f32 %v919, %v1015
        %v1080 = vmax.f32 %v920, %v1016
        %v1081 = vmax.f32 %v921, %v1017
        %v1082 = vmax.f32 %v922, %v1018
        %v1083 = vmax.f32 %v923, %v1019
        %v1084 = vmax.f32 %v924, %v1020
        %v1085 = vmax.f32 %v925, %v1021
        %v1086 = vmax.f32 %v926, %v1022
        %v1087 = vmax.f32 %v927, %v1023
        %v1088 = vmax.f32 %v928, %v1024
        %v1089 = vmax.f32 %v929, %v1025
        %v1090 = vmax.f32 %v930, %v1026
        %v1091 = vmax.f32 %v931, %v1027
        %v1092 = vmax.f32 %v932, %v1028
        %v1093 = vmax.f32 %v933, %v1029
        %v1094 = vmax.f32 %v934, %v1030
        %v1095 = vmax.f32 %v935, %v1031
        %v1096 = vmax.f32 %v936, %v1032
        %v1097 = vmax.f32 %v937, %v1033
        %v1098 = vmax.f32 %v938, %v1034
        %v1099 = vmax.f32 %v939, %v1035
        %v1100 = vmax.f32 %v940, %v1036
        %v1101 = vmax.f32 %v941, %v1037
        %v1102 = vmax.f32 %v942, %v1038
        %v1103 = vmax.f32 %v943, %v1039
        %v1104 = vmax.f32 %v944, %v1040
        %v1105 = vmax.f32 %v945, %v1041
        %v1106 = vmax.f32 %v946, %v1042
        %v1107 = vmax.f32 %v947, %v1043
        %v1108 = vmax.f32 %v948, %v1044
        %v1109 = vmax.f32 %v949, %v1045
        %v1110 = vmax.f32 %v950, %v1046
        %v1111 = vmax.f32 %v951, %v1047
        %v1112 = vmax.f32 %v952, %v1048
        %v1113 = vmax.f32 %v953, %v1049
        %v1114 = vmax.f32 %v954, %v1050
        %v1115 = vmax.f32 %v955, %v1051
        %v1116 = vmax.f32 %v956, %v1052
        %v1117 = vmax.f32 %v957, %v1053
        %v1118 = vmax.f32 %v958, %v1054
        %v1119 = vmax.f32 %v959, %v1055
        %v1120 = vmax.f32 %v960, %v1056
        %v1121 = vmax.f32 %v961, %v1057
        %v1122 = vmax.f32 %v962, %v1058
        %v1123 = vmax.f32 %v963, %v1059
        %v1124 = vmax.f32 %v964, %v1060
        %v1125 = vmax.f32 %v965, %v1061
        %v1126 = vmax.f32 %v966, %v1062
        %v1127 = vmax.f32 %v967, %v1063
        %v1128 = vmax.f32 %v968, %v1064
        %v1129 = vmax.f32 %v969, %v1065
        %v1130 = vmax.f32 %v970, %v1066
        %v1131 = vmax.f32 %v971, %v1067
        %v1132 = vmax.f32 %v972, %v1068
        %v1133 = vmax.f32 %v973, %v1069
        %v1134 = vmax.f32 %v974, %v1070
        %v1135 = vmax.f32 %v975, %v1071
        %v1136 = vmax.f32 %v976, %v1072
        %v1137 = vsel %vm993, 16843009, 0
        %v1138 = vsel %vm994, 16843009, 0
        %v1139 = vsel %vm995, 16843009, 0
        %v1140 = vsel %vm996, 16843009, 0
        %v1141 = vsel %vm997, 16843009, 0
        %v1142 = vsel %vm998, 16843009, 0
        %v1143 = vsel %vm999, 16843009, 0
        %v1144 = vsel %vm1000, 16843009, 0
        %v1145 = vsel %vm1001, 16843009, 0
        %v1146 = vsel %vm1002, 16843009, 0
        %v1147 = vsel %vm1003, 16843009, 0
        %v1148 = vsel %vm1004, 16843009, 0
        %v1149 = vsel %vm1005, 16843009, 0
        %v1150 = vsel %vm1006, 16843009, 0
        %v1151 = vsel %vm1007, 16843009, 0
        %v1152 = vsel %vm1008, 16843009, 0
        %v1153 = vunpack.c.0.s8 %v1137
        %v1154 = vunpack.c.0.s8 %v1138
        %v1155 = vunpack.c.1.s8 %v1137
        %v1156 = vunpack.c.1.s8 %v1138
        %v1157 = vunpack.c.2.s8 %v1137
        %v1158 = vunpack.c.2.s8 %v1138
        %v1159 = vunpack.c.3.s8 %v1137
        %v1160 = vunpack.c.3.s8 %v1138
        %v1161 = vunpack.c.0.s8 %v1139
        %v1162 = vunpack.c.0.s8 %v1140
        %v1163 = vunpack.c.1.s8 %v1139
        %v1164 = vunpack.c.1.s8 %v1140
        %v1165 = vunpack.c.2.s8 %v1139
        %v1166 = vunpack.c.2.s8 %v1140
        %v1167 = vunpack.c.3.s8 %v1139
        %v1168 = vunpack.c.3.s8 %v1140
        %v1169 = vunpack.c.0.s8 %v1141
        %v1170 = vunpack.c.0.s8 %v1142
        %v1171 = vunpack.c.1.s8 %v1141
        %v1172 = vunpack.c.1.s8 %v1142
        %v1173 = vunpack.c.2.s8 %v1141
        %v1174 = vunpack.c.2.s8 %v1142
        %v1175 = vunpack.c.3.s8 %v1141
        %v1176 = vunpack.c.3.s8 %v1142
        %v1177 = vunpack.c.0.s8 %v1143
        %v1178 = vunpack.c.0.s8 %v1144
        %v1179 = vunpack.c.1.s8 %v1143
        %v1180 = vunpack.c.1.s8 %v1144
        %v1181 = vunpack.c.2.s8 %v1143
        %v1182 = vunpack.c.2.s8 %v1144
        %v1183 = vunpack.c.3.s8 %v1143
        %v1184 = vunpack.c.3.s8 %v1144
        %v1185 = vunpack.c.0.s8 %v1145
        %v1186 = vunpack.c.0.s8 %v1146
        %v1187 = vunpack.c.1.s8 %v1145
        %v1188 = vunpack.c.1.s8 %v1146
        %v1189 = vunpack.c.2.s8 %v1145
        %v1190 = vunpack.c.2.s8 %v1146
        %v1191 = vunpack.c.3.s8 %v1145
        %v1192 = vunpack.c.3.s8 %v1146
        %v1193 = vunpack.c.0.s8 %v1147
        %v1194 = vunpack.c.0.s8 %v1148
        %v1195 = vunpack.c.1.s8 %v1147
        %v1196 = vunpack.c.1.s8 %v1148
        %v1197 = vunpack.c.2.s8 %v1147
        %v1198 = vunpack.c.2.s8 %v1148
        %v1199 = vunpack.c.3.s8 %v1147
        %v1200 = vunpack.c.3.s8 %v1148
        %v1201 = vunpack.c.0.s8 %v1149
        %v1202 = vunpack.c.0.s8 %v1150
        %v1203 = vunpack.c.1.s8 %v1149
        %v1204 = vunpack.c.1.s8 %v1150
        %v1205 = vunpack.c.2.s8 %v1149
        %v1206 = vunpack.c.2.s8 %v1150
        %v1207 = vunpack.c.3.s8 %v1149
        %v1208 = vunpack.c.3.s8 %v1150
        %v1209 = vunpack.c.0.s8 %v1151
        %v1210 = vunpack.c.0.s8 %v1152
        %v1211 = vunpack.c.1.s8 %v1151
        %v1212 = vunpack.c.1.s8 %v1152
        %v1213 = vunpack.c.2.s8 %v1151
        %v1214 = vunpack.c.2.s8 %v1152
        %v1215 = vunpack.c.3.s8 %v1151
        %v1216 = vunpack.c.3.s8 %v1152
        %v1217 = vpack.c.b16 %v1154, %v1153
        %v1218 = vpack.c.b8 %v1217, %v1217
        %v1219 = vpack.c.b16 %v1156, %v1155
        %v1220 = vpack.c.b8 %v1219, %v1219
        %v1221 = vpack.c.b16 %v1158, %v1157
        %v1222 = vpack.c.b8 %v1221, %v1221
        %v1223 = vpack.c.b16 %v1160, %v1159
        %v1224 = vpack.c.b8 %v1223, %v1223
        %v1225 = vpack.c.b16 %v1162, %v1161
        %v1226 = vpack.c.b8 %v1225, %v1225
        %v1227 = vpack.c.b16 %v1164, %v1163
        %v1228 = vpack.c.b8 %v1227, %v1227
        %v1229 = vpack.c.b16 %v1166, %v1165
        %v1230 = vpack.c.b8 %v1229, %v1229
        %v1231 = vpack.c.b16 %v1168, %v1167
        %v1232 = vpack.c.b8 %v1231, %v1231
        %v1233 = vpack.c.b16 %v1170, %v1169
        %v1234 = vpack.c.b8 %v1233, %v1233
        %v1235 = vpack.c.b16 %v1172, %v1171
        %v1236 = vpack.c.b8 %v1235, %v1235
        %v1237 = vpack.c.b16 %v1174, %v1173
        %v1238 = vpack.c.b8 %v1237, %v1237
        %v1239 = vpack.c.b16 %v1176, %v1175
        %v1240 = vpack.c.b8 %v1239, %v1239
        %v1241 = vpack.c.b16 %v1178, %v1177
        %v1242 = vpack.c.b8 %v1241, %v1241
        %v1243 = vpack.c.b16 %v1180, %v1179
        %v1244 = vpack.c.b8 %v1243, %v1243
        %v1245 = vpack.c.b16 %v1182, %v1181
        %v1246 = vpack.c.b8 %v1245, %v1245
        %v1247 = vpack.c.b16 %v1184, %v1183
        %v1248 = vpack.c.b8 %v1247, %v1247
        %v1249 = vpack.c.b16 %v1186, %v1185
        %v1250 = vpack.c.b8 %v1249, %v1249
        %v1251 = vpack.c.b16 %v1188, %v1187
        %v1252 = vpack.c.b8 %v1251, %v1251
        %v1253 = vpack.c.b16 %v1190, %v1189
        %v1254 = vpack.c.b8 %v1253, %v1253
        %v1255 = vpack.c.b16 %v1192, %v1191
        %v1256 = vpack.c.b8 %v1255, %v1255
        %v1257 = vpack.c.b16 %v1194, %v1193
        %v1258 = vpack.c.b8 %v1257, %v1257
        %v1259 = vpack.c.b16 %v1196, %v1195
        %v1260 = vpack.c.b8 %v1259, %v1259
        %v1261 = vpack.c.b16 %v1198, %v1197
        %v1262 = vpack.c.b8 %v1261, %v1261
        %v1263 = vpack.c.b16 %v1200, %v1199
        %v1264 = vpack.c.b8 %v1263, %v1263
        %v1265 = vpack.c.b16 %v1202, %v1201
        %v1266 = vpack.c.b8 %v1265, %v1265
        %v1267 = vpack.c.b16 %v1204, %v1203
        %v1268 = vpack.c.b8 %v1267, %v1267
        %v1269 = vpack.c.b16 %v1206, %v1205
        %v1270 = vpack.c.b8 %v1269, %v1269
        %v1271 = vpack.c.b16 %v1208, %v1207
        %v1272 = vpack.c.b8 %v1271, %v1271
        %v1273 = vpack.c.b16 %v1210, %v1209
        %v1274 = vpack.c.b8 %v1273, %v1273
        %v1275 = vpack.c.b16 %v1212, %v1211
        %v1276 = vpack.c.b8 %v1275, %v1275
        %v1277 = vpack.c.b16 %v1214, %v1213
        %v1278 = vpack.c.b8 %v1277, %v1277
        %v1279 = vpack.c.b16 %v1216, %v1215
        %v1280 = vpack.c.b8 %v1279, %v1279
        %vm1281 = vnez %v1218
        %vm1282 = vnez %v1220
        %vm1283 = vnez %v1222
        %vm1284 = vnez %v1224
        %vm1285 = vnez %v1226
        %vm1286 = vnez %v1228
        %vm1287 = vnez %v1230
        %vm1288 = vnez %v1232
        %vm1289 = vnez %v1234
        %vm1290 = vnez %v1236
        %vm1291 = vnez %v1238
        %vm1292 = vnez %v1240
        %vm1293 = vnez %v1242
        %vm1294 = vnez %v1244
        %vm1295 = vnez %v1246
        %vm1296 = vnez %v1248
        %vm1297 = vnez %v1250
        %vm1298 = vnez %v1252
        %vm1299 = vnez %v1254
        %vm1300 = vnez %v1256
        %vm1301 = vnez %v1258
        %vm1302 = vnez %v1260
        %vm1303 = vnez %v1262
        %vm1304 = vnez %v1264
        %vm1305 = vnez %v1266
        %vm1306 = vnez %v1268
        %vm1307 = vnez %v1270
        %vm1308 = vnez %v1272
        %vm1309 = vnez %v1274
        %vm1310 = vnez %v1276
        %vm1311 = vnez %v1278
        %vm1312 = vnez %v1280
        %v1313 = vsel %vm1281, 16843009, 0
        %v1314 = vsel %vm1282, 16843009, 0
        %v1315 = vsel %vm1283, 16843009, 0
        %v1316 = vsel %vm1284, 16843009, 0
        %v1317 = vsel %vm1285, 16843009, 0
        %v1318 = vsel %vm1286, 16843009, 0
        %v1319 = vsel %vm1287, 16843009, 0
        %v1320 = vsel %vm1288, 16843009, 0
        %v1321 = vsel %vm1289, 16843009, 0
        %v1322 = vsel %vm1290, 16843009, 0
        %v1323 = vsel %vm1291, 16843009, 0
        %v1324 = vsel %vm1292, 16843009, 0
        %v1325 = vsel %vm1293, 16843009, 0
        %v1326 = vsel %vm1294, 16843009, 0
        %v1327 = vsel %vm1295, 16843009, 0
        %v1328 = vsel %vm1296, 16843009, 0
        %v1329 = vsel %vm1297, 16843009, 0
        %v1330 = vsel %vm1298, 16843009, 0
        %v1331 = vsel %vm1299, 16843009, 0
        %v1332 = vsel %vm1300, 16843009, 0
        %v1333 = vsel %vm1301, 16843009, 0
        %v1334 = vsel %vm1302, 16843009, 0
        %v1335 = vsel %vm1303, 16843009, 0
        %v1336 = vsel %vm1304, 16843009, 0
        %v1337 = vsel %vm1305, 16843009, 0
        %v1338 = vsel %vm1306, 16843009, 0
        %v1339 = vsel %vm1307, 16843009, 0
        %v1340 = vsel %vm1308, 16843009, 0
        %v1341 = vsel %vm1309, 16843009, 0
        %v1342 = vsel %vm1310, 16843009, 0
        %v1343 = vsel %vm1311, 16843009, 0
        %v1344 = vsel %vm1312, 16843009, 0
        %v1345 = vunpack.c.0.s8 %v1313
        %v1346 = vunpack.c.1.s8 %v1313
        %v1347 = vunpack.c.0.s8 %v1314
        %v1348 = vunpack.c.1.s8 %v1314
        %v1349 = vunpack.c.0.s8 %v1315
        %v1350 = vunpack.c.1.s8 %v1315
        %v1351 = vunpack.c.0.s8 %v1316
        %v1352 = vunpack.c.1.s8 %v1316
        %v1353 = vunpack.c.0.s8 %v1317
        %v1354 = vunpack.c.1.s8 %v1317
        %v1355 = vunpack.c.0.s8 %v1318
        %v1356 = vunpack.c.1.s8 %v1318
        %v1357 = vunpack.c.0.s8 %v1319
        %v1358 = vunpack.c.1.s8 %v1319
        %v1359 = vunpack.c.0.s8 %v1320
        %v1360 = vunpack.c.1.s8 %v1320
        %v1361 = vunpack.c.0.s8 %v1321
        %v1362 = vunpack.c.1.s8 %v1321
        %v1363 = vunpack.c.0.s8 %v1322
        %v1364 = vunpack.c.1.s8 %v1322
        %v1365 = vunpack.c.0.s8 %v1323
        %v1366 = vunpack.c.1.s8 %v1323
        %v1367 = vunpack.c.0.s8 %v1324
        %v1368 = vunpack.c.1.s8 %v1324
        %v1369 = vunpack.c.0.s8 %v1325
        %v1370 = vunpack.c.1.s8 %v1325
        %v1371 = vunpack.c.0.s8 %v1326
        %v1372 = vunpack.c.1.s8 %v1326
        %v1373 = vunpack.c.0.s8 %v1327
        %v1374 = vunpack.c.1.s8 %v1327
        %v1375 = vunpack.c.0.s8 %v1328
        %v1376 = vunpack.c.1.s8 %v1328
        %v1377 = vunpack.c.0.s8 %v1329
        %v1378 = vunpack.c.1.s8 %v1329
        %v1379 = vunpack.c.0.s8 %v1330
        %v1380 = vunpack.c.1.s8 %v1330
        %v1381 = vunpack.c.0.s8 %v1331
        %v1382 = vunpack.c.1.s8 %v1331
        %v1383 = vunpack.c.0.s8 %v1332
        %v1384 = vunpack.c.1.s8 %v1332
        %v1385 = vunpack.c.0.s8 %v1333
        %v1386 = vunpack.c.1.s8 %v1333
        %v1387 = vunpack.c.0.s8 %v1334
        %v1388 = vunpack.c.1.s8 %v1334
        %v1389 = vunpack.c.0.s8 %v1335
        %v1390 = vunpack.c.1.s8 %v1335
        %v1391 = vunpack.c.0.s8 %v1336
        %v1392 = vunpack.c.1.s8 %v1336
        %v1393 = vunpack.c.0.s8 %v1337
        %v1394 = vunpack.c.1.s8 %v1337
        %v1395 = vunpack.c.0.s8 %v1338
        %v1396 = vunpack.c.1.s8 %v1338
        %v1397 = vunpack.c.0.s8 %v1339
        %v1398 = vunpack.c.1.s8 %v1339
        %v1399 = vunpack.c.0.s8 %v1340
        %v1400 = vunpack.c.1.s8 %v1340
        %v1401 = vunpack.c.0.s8 %v1341
        %v1402 = vunpack.c.1.s8 %v1341
        %v1403 = vunpack.c.0.s8 %v1342
        %v1404 = vunpack.c.1.s8 %v1342
        %v1405 = vunpack.c.0.s8 %v1343
        %v1406 = vunpack.c.1.s8 %v1343
        %v1407 = vunpack.c.0.s8 %v1344
        %v1408 = vunpack.c.1.s8 %v1344
        %vm1409 = vcmp.ne.s32.totalorder %v1345, 0
        %vm1410 = vcmp.ne.s32.totalorder %v1346, 0
        %vm1411 = vcmp.ne.s32.totalorder %v1347, 0
        %vm1412 = vcmp.ne.s32.totalorder %v1348, 0
        %vm1413 = vcmp.ne.s32.totalorder %v1349, 0
        %vm1414 = vcmp.ne.s32.totalorder %v1350, 0
        %vm1415 = vcmp.ne.s32.totalorder %v1351, 0
        %vm1416 = vcmp.ne.s32.totalorder %v1352, 0
        %vm1417 = vcmp.ne.s32.totalorder %v1353, 0
        %vm1418 = vcmp.ne.s32.totalorder %v1354, 0
        %vm1419 = vcmp.ne.s32.totalorder %v1355, 0
        %vm1420 = vcmp.ne.s32.totalorder %v1356, 0
        %vm1421 = vcmp.ne.s32.totalorder %v1357, 0
        %vm1422 = vcmp.ne.s32.totalorder %v1358, 0
        %vm1423 = vcmp.ne.s32.totalorder %v1359, 0
        %vm1424 = vcmp.ne.s32.totalorder %v1360, 0
        %vm1425 = vcmp.ne.s32.totalorder %v1361, 0
        %vm1426 = vcmp.ne.s32.totalorder %v1362, 0
        %vm1427 = vcmp.ne.s32.totalorder %v1363, 0
        %vm1428 = vcmp.ne.s32.totalorder %v1364, 0
        %vm1429 = vcmp.ne.s32.totalorder %v1365, 0
        %vm1430 = vcmp.ne.s32.totalorder %v1366, 0
        %vm1431 = vcmp.ne.s32.totalorder %v1367, 0
        %vm1432 = vcmp.ne.s32.totalorder %v1368, 0
        %vm1433 = vcmp.ne.s32.totalorder %v1369, 0
        %vm1434 = vcmp.ne.s32.totalorder %v1370, 0
        %vm1435 = vcmp.ne.s32.totalorder %v1371, 0
        %vm1436 = vcmp.ne.s32.totalorder %v1372, 0
        %vm1437 = vcmp.ne.s32.totalorder %v1373, 0
        %vm1438 = vcmp.ne.s32.totalorder %v1374, 0
        %vm1439 = vcmp.ne.s32.totalorder %v1375, 0
        %vm1440 = vcmp.ne.s32.totalorder %v1376, 0
        %vm1441 = vcmp.ne.s32.totalorder %v1377, 0
        %vm1442 = vcmp.ne.s32.totalorder %v1378, 0
        %vm1443 = vcmp.ne.s32.totalorder %v1379, 0
        %vm1444 = vcmp.ne.s32.totalorder %v1380, 0
        %vm1445 = vcmp.ne.s32.totalorder %v1381, 0
        %vm1446 = vcmp.ne.s32.totalorder %v1382, 0
        %vm1447 = vcmp.ne.s32.totalorder %v1383, 0
        %vm1448 = vcmp.ne.s32.totalorder %v1384, 0
        %vm1449 = vcmp.ne.s32.totalorder %v1385, 0
        %vm1450 = vcmp.ne.s32.totalorder %v1386, 0
        %vm1451 = vcmp.ne.s32.totalorder %v1387, 0
        %vm1452 = vcmp.ne.s32.totalorder %v1388, 0
        %vm1453 = vcmp.ne.s32.totalorder %v1389, 0
        %vm1454 = vcmp.ne.s32.totalorder %v1390, 0
        %vm1455 = vcmp.ne.s32.totalorder %v1391, 0
        %vm1456 = vcmp.ne.s32.totalorder %v1392, 0
        %vm1457 = vcmp.ne.s32.totalorder %v1393, 0
        %vm1458 = vcmp.ne.s32.totalorder %v1394, 0
        %vm1459 = vcmp.ne.s32.totalorder %v1395, 0
        %vm1460 = vcmp.ne.s32.totalorder %v1396, 0
        %vm1461 = vcmp.ne.s32.totalorder %v1397, 0
        %vm1462 = vcmp.ne.s32.totalorder %v1398, 0
        %vm1463 = vcmp.ne.s32.totalorder %v1399, 0
        %vm1464 = vcmp.ne.s32.totalorder %v1400, 0
        %vm1465 = vcmp.ne.s32.totalorder %v1401, 0
        %vm1466 = vcmp.ne.s32.totalorder %v1402, 0
        %vm1467 = vcmp.ne.s32.totalorder %v1403, 0
        %vm1468 = vcmp.ne.s32.totalorder %v1404, 0
        %vm1469 = vcmp.ne.s32.totalorder %v1405, 0
        %vm1470 = vcmp.ne.s32.totalorder %v1406, 0
        %vm1471 = vcmp.ne.s32.totalorder %v1407, 0
        %vm1472 = vcmp.ne.s32.totalorder %v1408, 0
        %v1473 = vsel %vm1409, %v1073, -9e+15
        %v1474 = vsel %vm1410, %v1074, -9e+15
        %v1475 = vsel %vm1411, %v1075, -9e+15
        %v1476 = vsel %vm1412, %v1076, -9e+15
        %v1477 = vsel %vm1413, %v1077, -9e+15
        %v1478 = vsel %vm1414, %v1078, -9e+15
        %v1479 = vsel %vm1415, %v1079, -9e+15
        %v1480 = vsel %vm1416, %v1080, -9e+15
        %v1481 = vsel %vm1417, %v1081, -9e+15
        %v1482 = vsel %vm1418, %v1082, -9e+15
        %v1483 = vsel %vm1419, %v1083, -9e+15
        %v1484 = vsel %vm1420, %v1084, -9e+15
        %v1485 = vsel %vm1421, %v1085, -9e+15
        %v1486 = vsel %vm1422, %v1086, -9e+15
        %v1487 = vsel %vm1423, %v1087, -9e+15
        %v1488 = vsel %vm1424, %v1088, -9e+15
        %v1489 = vsel %vm1425, %v1089, -9e+15
        %v1490 = vsel %vm1426, %v1090, -9e+15
        %v1491 = vsel %vm1427, %v1091, -9e+15
        %v1492 = vsel %vm1428, %v1092, -9e+15
        %v1493 = vsel %vm1429, %v1093, -9e+15
        %v1494 = vsel %vm1430, %v1094, -9e+15
        %v1495 = vsel %vm1431, %v1095, -9e+15
        %v1496 = vsel %vm1432, %v1096, -9e+15
        %v1497 = vsel %vm1433, %v1097, -9e+15
        %v1498 = vsel %vm1434, %v1098, -9e+15
        %v1499 = vsel %vm1435, %v1099, -9e+15
        %v1500 = vsel %vm1436, %v1100, -9e+15
        %v1501 = vsel %vm1437, %v1101, -9e+15
        %v1502 = vsel %vm1438, %v1102, -9e+15
        %v1503 = vsel %vm1439, %v1103, -9e+15
        %v1504 = vsel %vm1440, %v1104, -9e+15
        %v1505 = vsel %vm1441, %v1105, -9e+15
        %v1506 = vsel %vm1442, %v1106, -9e+15
        %v1507 = vsel %vm1443, %v1107, -9e+15
        %v1508 = vsel %vm1444, %v1108, -9e+15
        %v1509 = vsel %vm1445, %v1109, -9e+15
        %v1510 = vsel %vm1446, %v1110, -9e+15
        %v1511 = vsel %vm1447, %v1111, -9e+15
        %v1512 = vsel %vm1448, %v1112, -9e+15
        %v1513 = vsel %vm1449, %v1113, -9e+15
        %v1514 = vsel %vm1450, %v1114, -9e+15
        %v1515 = vsel %vm1451, %v1115, -9e+15
        %v1516 = vsel %vm1452, %v1116, -9e+15
        %v1517 = vsel %vm1453, %v1117, -9e+15
        %v1518 = vsel %vm1454, %v1118, -9e+15
        %v1519 = vsel %vm1455, %v1119, -9e+15
        %v1520 = vsel %vm1456, %v1120, -9e+15
        %v1521 = vsel %vm1457, %v1121, -9e+15
        %v1522 = vsel %vm1458, %v1122, -9e+15
        %v1523 = vsel %vm1459, %v1123, -9e+15
        %v1524 = vsel %vm1460, %v1124, -9e+15
        %v1525 = vsel %vm1461, %v1125, -9e+15
        %v1526 = vsel %vm1462, %v1126, -9e+15
        %v1527 = vsel %vm1463, %v1127, -9e+15
        %v1528 = vsel %vm1464, %v1128, -9e+15
        %v1529 = vsel %vm1465, %v1129, -9e+15
        %v1530 = vsel %vm1466, %v1130, -9e+15
        %v1531 = vsel %vm1467, %v1131, -9e+15
        %v1532 = vsel %vm1468, %v1132, -9e+15
        %v1533 = vsel %vm1469, %v1133, -9e+15
        %v1534 = vsel %vm1470, %v1134, -9e+15
        %v1535 = vsel %vm1471, %v1135, -9e+15
        %v1536 = vsel %vm1472, %v1136, -9e+15
        %v1537 = vmax.f32 %v1473, %v1474
        %1538 = vmax.xlane.f32.xlu0 %v1537
        %v1539 = vpop.xlane.xlu0 %1538
        %v1540 = vmax.f32 %v1475, %v1476
        %1541 = vmax.xlane.f32.xlu0 %v1540
        %v1542 = vpop.xlane.xlu0 %1541
        %v1543 = vmax.f32 %v1477, %v1478
        %1544 = vmax.xlane.f32.xlu0 %v1543
        %v1545 = vpop.xlane.xlu0 %1544
        %v1546 = vmax.f32 %v1479, %v1480
        %1547 = vmax.xlane.f32.xlu0 %v1546
        %v1548 = vpop.xlane.xlu0 %1547
        %v1549 = vmax.f32 %v1481, %v1482
        %1550 = vmax.xlane.f32.xlu0 %v1549
        %v1551 = vpop.xlane.xlu0 %1550
        %v1552 = vmax.f32 %v1483, %v1484
        %1553 = vmax.xlane.f32.xlu0 %v1552
        %v1554 = vpop.xlane.xlu0 %1553
        %v1555 = vmax.f32 %v1485, %v1486
        %1556 = vmax.xlane.f32.xlu0 %v1555
        %v1557 = vpop.xlane.xlu0 %1556
        %v1558 = vmax.f32 %v1487, %v1488
        %1559 = vmax.xlane.f32.xlu0 %v1558
        %v1560 = vpop.xlane.xlu0 %1559
        %v1561 = vmax.f32 %v1489, %v1490
        %1562 = vmax.xlane.f32.xlu0 %v1561
        %v1563 = vpop.xlane.xlu0 %1562
        %v1564 = vmax.f32 %v1491, %v1492
        %1565 = vmax.xlane.f32.xlu0 %v1564
        %v1566 = vpop.xlane.xlu0 %1565
        %v1567 = vmax.f32 %v1493, %v1494
        %1568 = vmax.xlane.f32.xlu0 %v1567
        %v1569 = vpop.xlane.xlu0 %1568
        %v1570 = vmax.f32 %v1495, %v1496
        %1571 = vmax.xlane.f32.xlu0 %v1570
        %v1572 = vpop.xlane.xlu0 %1571
        %v1573 = vmax.f32 %v1497, %v1498
        %1574 = vmax.xlane.f32.xlu0 %v1573
        %v1575 = vpop.xlane.xlu0 %1574
        %v1576 = vmax.f32 %v1499, %v1500
        %1577 = vmax.xlane.f32.xlu0 %v1576
        %v1578 = vpop.xlane.xlu0 %1577
        %v1579 = vmax.f32 %v1501, %v1502
        %1580 = vmax.xlane.f32.xlu0 %v1579
        %v1581 = vpop.xlane.xlu0 %1580
        %v1582 = vmax.f32 %v1503, %v1504
        %1583 = vmax.xlane.f32.xlu0 %v1582
        %v1584 = vpop.xlane.xlu0 %1583
        %v1585 = vmax.f32 %v1505, %v1506
        %1586 = vmax.xlane.f32.xlu0 %v1585
        %v1587 = vpop.xlane.xlu0 %1586
        %v1588 = vmax.f32 %v1507, %v1508
        %1589 = vmax.xlane.f32.xlu0 %v1588
        %v1590 = vpop.xlane.xlu0 %1589
        %v1591 = vmax.f32 %v1509, %v1510
        %1592 = vmax.xlane.f32.xlu0 %v1591
        %v1593 = vpop.xlane.xlu0 %1592
        %v1594 = vmax.f32 %v1511, %v1512
        %1595 = vmax.xlane.f32.xlu0 %v1594
        %v1596 = vpop.xlane.xlu0 %1595
        %v1597 = vmax.f32 %v1513, %v1514
        %1598 = vmax.xlane.f32.xlu0 %v1597
        %v1599 = vpop.xlane.xlu0 %1598
        %v1600 = vmax.f32 %v1515, %v1516
        %1601 = vmax.xlane.f32.xlu0 %v1600
        %v1602 = vpop.xlane.xlu0 %1601
        %v1603 = vmax.f32 %v1517, %v1518
        %1604 = vmax.xlane.f32.xlu0 %v1603
        %v1605 = vpop.xlane.xlu0 %1604
        %v1606 = vmax.f32 %v1519, %v1520
        %1607 = vmax.xlane.f32.xlu0 %v1606
        %v1608 = vpop.xlane.xlu0 %1607
        %v1609 = vmax.f32 %v1521, %v1522
        %1610 = vmax.xlane.f32.xlu0 %v1609
        %v1611 = vpop.xlane.xlu0 %1610
        %v1612 = vmax.f32 %v1523, %v1524
        %1613 = vmax.xlane.f32.xlu0 %v1612
        %v1614 = vpop.xlane.xlu0 %1613
        %v1615 = vmax.f32 %v1525, %v1526
        %1616 = vmax.xlane.f32.xlu0 %v1615
        %v1617 = vpop.xlane.xlu0 %1616
        %v1618 = vmax.f32 %v1527, %v1528
        %1619 = vmax.xlane.f32.xlu0 %v1618
        %v1620 = vpop.xlane.xlu0 %1619
        %v1621 = vmax.f32 %v1529, %v1530
        %1622 = vmax.xlane.f32.xlu0 %v1621
        %v1623 = vpop.xlane.xlu0 %1622
        %v1624 = vmax.f32 %v1531, %v1532
        %1625 = vmax.xlane.f32.xlu0 %v1624
        %v1626 = vpop.xlane.xlu0 %1625
        %v1627 = vmax.f32 %v1533, %v1534
        %1628 = vmax.xlane.f32.xlu0 %v1627
        %v1629 = vpop.xlane.xlu0 %1628
        %v1630 = vmax.f32 %v1535, %v1536
        %1631 = vmax.xlane.f32.xlu0 %v1630
        %v1632 = vpop.xlane.xlu0 %1631
        %v1633 = vsub.f32 %v1473, %v1539
        %v1634 = vsub.f32 %v1474, %v1539
        %v1635 = vsub.f32 %v1475, %v1542
        %v1636 = vsub.f32 %v1476, %v1542
        %v1637 = vsub.f32 %v1477, %v1545
        %v1638 = vsub.f32 %v1478, %v1545
        %v1639 = vsub.f32 %v1479, %v1548
        %v1640 = vsub.f32 %v1480, %v1548
        %v1641 = vsub.f32 %v1481, %v1551
        %v1642 = vsub.f32 %v1482, %v1551
        %v1643 = vsub.f32 %v1483, %v1554
        %v1644 = vsub.f32 %v1484, %v1554
        %v1645 = vsub.f32 %v1485, %v1557
        %v1646 = vsub.f32 %v1486, %v1557
        %v1647 = vsub.f32 %v1487, %v1560
        %v1648 = vsub.f32 %v1488, %v1560
        %v1649 = vsub.f32 %v1489, %v1563
        %v1650 = vsub.f32 %v1490, %v1563
        %v1651 = vsub.f32 %v1491, %v1566
        %v1652 = vsub.f32 %v1492, %v1566
        %v1653 = vsub.f32 %v1493, %v1569
        %v1654 = vsub.f32 %v1494, %v1569
        %v1655 = vsub.f32 %v1495, %v1572
        %v1656 = vsub.f32 %v1496, %v1572
        %v1657 = vsub.f32 %v1497, %v1575
        %v1658 = vsub.f32 %v1498, %v1575
        %v1659 = vsub.f32 %v1499, %v1578
        %v1660 = vsub.f32 %v1500, %v1578
        %v1661 = vsub.f32 %v1501, %v1581
        %v1662 = vsub.f32 %v1502, %v1581
        %v1663 = vsub.f32 %v1503, %v1584
        %v1664 = vsub.f32 %v1504, %v1584
        %v1665 = vsub.f32 %v1505, %v1587
        %v1666 = vsub.f32 %v1506, %v1587
        %v1667 = vsub.f32 %v1507, %v1590
        %v1668 = vsub.f32 %v1508, %v1590
        %v1669 = vsub.f32 %v1509, %v1593
        %v1670 = vsub.f32 %v1510, %v1593
        %v1671 = vsub.f32 %v1511, %v1596
        %v1672 = vsub.f32 %v1512, %v1596
        %v1673 = vsub.f32 %v1513, %v1599
        %v1674 = vsub.f32 %v1514, %v1599
        %v1675 = vsub.f32 %v1515, %v1602
        %v1676 = vsub.f32 %v1516, %v1602
        %v1677 = vsub.f32 %v1517, %v1605
        %v1678 = vsub.f32 %v1518, %v1605
        %v1679 = vsub.f32 %v1519, %v1608
        %v1680 = vsub.f32 %v1520, %v1608
        %v1681 = vsub.f32 %v1521, %v1611
        %v1682 = vsub.f32 %v1522, %v1611
        %v1683 = vsub.f32 %v1523, %v1614
        %v1684 = vsub.f32 %v1524, %v1614
        %v1685 = vsub.f32 %v1525, %v1617
        %v1686 = vsub.f32 %v1526, %v1617
        %v1687 = vsub.f32 %v1527, %v1620
        %v1688 = vsub.f32 %v1528, %v1620
        %v1689 = vsub.f32 %v1529, %v1623
        %v1690 = vsub.f32 %v1530, %v1623
        %v1691 = vsub.f32 %v1531, %v1626
        %v1692 = vsub.f32 %v1532, %v1626
        %v1693 = vsub.f32 %v1533, %v1629
        %v1694 = vsub.f32 %v1534, %v1629
        %v1695 = vsub.f32 %v1535, %v1632
        %v1696 = vsub.f32 %v1536, %v1632
        %v1697 = vmul.f32 %v1633, 1.442695
        %v1698 = vpow.pop %v1697
        %v1699 = vmul.f32 %v1634, 1.442695
        %v1700 = vpow.pop %v1699
        %v1701 = vmul.f32 %v1635, 1.442695
        %v1702 = vpow.pop %v1701
        %v1703 = vmul.f32 %v1636, 1.442695
        %v1704 = vpow.pop %v1703
        %v1705 = vmul.f32 %v1637, 1.442695
        %v1706 = vpow.pop %v1705
        %v1707 = vmul.f32 %v1638, 1.442695
        %v1708 = vpow.pop %v1707
        %v1709 = vmul.f32 %v1639, 1.442695
        %v1710 = vpow.pop %v1709
        %v1711 = vmul.f32 %v1640, 1.442695
        %v1712 = vpow.pop %v1711
        %v1713 = vmul.f32 %v1641, 1.442695
        %v1714 = vpow.pop %v1713
        %v1715 = vmul.f32 %v1642, 1.442695
        %v1716 = vpow.pop %v1715
        %v1717 = vmul.f32 %v1643, 1.442695
        %v1718 = vpow.pop %v1717
        %v1719 = vmul.f32 %v1644, 1.442695
        %v1720 = vpow.pop %v1719
        %v1721 = vmul.f32 %v1645, 1.442695
        %v1722 = vpow.pop %v1721
        %v1723 = vmul.f32 %v1646, 1.442695
        %v1724 = vpow.pop %v1723
        %v1725 = vmul.f32 %v1647, 1.442695
        %v1726 = vpow.pop %v1725
        %v1727 = vmul.f32 %v1648, 1.442695
        %v1728 = vpow.pop %v1727
        %v1729 = vmul.f32 %v1649, 1.442695
        %v1730 = vpow.pop %v1729
        %v1731 = vmul.f32 %v1650, 1.442695
        %v1732 = vpow.pop %v1731
        %v1733 = vmul.f32 %v1651, 1.442695
        %v1734 = vpow.pop %v1733
        %v1735 = vmul.f32 %v1652, 1.442695
        %v1736 = vpow.pop %v1735
        %v1737 = vmul.f32 %v1653, 1.442695
        %v1738 = vpow.pop %v1737
        %v1739 = vmul.f32 %v1654, 1.442695
        %v1740 = vpow.pop %v1739
        %v1741 = vmul.f32 %v1655, 1.442695
        %v1742 = vpow.pop %v1741
        %v1743 = vmul.f32 %v1656, 1.442695
        %v1744 = vpow.pop %v1743
        %v1745 = vmul.f32 %v1657, 1.442695
        %v1746 = vpow.pop %v1745
        %v1747 = vmul.f32 %v1658, 1.442695
        %v1748 = vpow.pop %v1747
        %v1749 = vmul.f32 %v1659, 1.442695
        %v1750 = vpow.pop %v1749
        %v1751 = vmul.f32 %v1660, 1.442695
        %v1752 = vpow.pop %v1751
        %v1753 = vmul.f32 %v1661, 1.442695
        %v1754 = vpow.pop %v1753
        %v1755 = vmul.f32 %v1662, 1.442695
        %v1756 = vpow.pop %v1755
        %v1757 = vmul.f32 %v1663, 1.442695
        %v1758 = vpow.pop %v1757
        %v1759 = vmul.f32 %v1664, 1.442695
        %v1760 = vpow.pop %v1759
        %v1761 = vmul.f32 %v1665, 1.442695
        %v1762 = vpow.pop %v1761
        %v1763 = vmul.f32 %v1666, 1.442695
        %v1764 = vpow.pop %v1763
        %v1765 = vmul.f32 %v1667, 1.442695
        %v1766 = vpow.pop %v1765
        %v1767 = vmul.f32 %v1668, 1.442695
        %v1768 = vpow.pop %v1767
        %v1769 = vmul.f32 %v1669, 1.442695
        %v1770 = vpow.pop %v1769
        %v1771 = vmul.f32 %v1670, 1.442695
        %v1772 = vpow.pop %v1771
        %v1773 = vmul.f32 %v1671, 1.442695
        %v1774 = vpow.pop %v1773
        %v1775 = vmul.f32 %v1672, 1.442695
        %v1776 = vpow.pop %v1775
        %v1777 = vmul.f32 %v1673, 1.442695
        %v1778 = vpow.pop %v1777
        %v1779 = vmul.f32 %v1674, 1.442695
        %v1780 = vpow.pop %v1779
        %v1781 = vmul.f32 %v1675, 1.442695
        %v1782 = vpow.pop %v1781
        %v1783 = vmul.f32 %v1676, 1.442695
        %v1784 = vpow.pop %v1783
        %v1785 = vmul.f32 %v1677, 1.442695
        %v1786 = vpow.pop %v1785
        %v1787 = vmul.f32 %v1678, 1.442695
        %v1788 = vpow.pop %v1787
        %v1789 = vmul.f32 %v1679, 1.442695
        %v1790 = vpow.pop %v1789
        %v1791 = vmul.f32 %v1680, 1.442695
        %v1792 = vpow.pop %v1791
        %v1793 = vmul.f32 %v1681, 1.442695
        %v1794 = vpow.pop %v1793
        %v1795 = vmul.f32 %v1682, 1.442695
        %v1796 = vpow.pop %v1795
        %v1797 = vmul.f32 %v1683, 1.442695
        %v1798 = vpow.pop %v1797
        %v1799 = vmul.f32 %v1684, 1.442695
        %v1800 = vpow.pop %v1799
        %v1801 = vmul.f32 %v1685, 1.442695
        %v1802 = vpow.pop %v1801
        %v1803 = vmul.f32 %v1686, 1.442695
        %v1804 = vpow.pop %v1803
        %v1805 = vmul.f32 %v1687, 1.442695
        %v1806 = vpow.pop %v1805
        %v1807 = vmul.f32 %v1688, 1.442695
        %v1808 = vpow.pop %v1807
        %v1809 = vmul.f32 %v1689, 1.442695
        %v1810 = vpow.pop %v1809
        %v1811 = vmul.f32 %v1690, 1.442695
        %v1812 = vpow.pop %v1811
        %v1813 = vmul.f32 %v1691, 1.442695
        %v1814 = vpow.pop %v1813
        %v1815 = vmul.f32 %v1692, 1.442695
        %v1816 = vpow.pop %v1815
        %v1817 = vmul.f32 %v1693, 1.442695
        %v1818 = vpow.pop %v1817
        %v1819 = vmul.f32 %v1694, 1.442695
        %v1820 = vpow.pop %v1819
        %v1821 = vmul.f32 %v1695, 1.442695
        %v1822 = vpow.pop %v1821
        %v1823 = vmul.f32 %v1696, 1.442695
        %v1824 = vpow.pop %v1823
        %v1825 = vadd.f32 %v1698, %v1700
        %1826 = vadd.xlane.f32.xlu0 %v1825
        %v1827 = vpop.xlane.xlu0 %1826
        %v1828 = vadd.f32 %v1702, %v1704
        %1829 = vadd.xlane.f32.xlu0 %v1828
        %v1830 = vpop.xlane.xlu0 %1829
        %v1831 = vadd.f32 %v1706, %v1708
        %1832 = vadd.xlane.f32.xlu0 %v1831
        %v1833 = vpop.xlane.xlu0 %1832
        %v1834 = vadd.f32 %v1710, %v1712
        %1835 = vadd.xlane.f32.xlu0 %v1834
        %v1836 = vpop.xlane.xlu0 %1835
        %v1837 = vadd.f32 %v1714, %v1716
        %1838 = vadd.xlane.f32.xlu0 %v1837
        %v1839 = vpop.xlane.xlu0 %1838
        %v1840 = vadd.f32 %v1718, %v1720
        %1841 = vadd.xlane.f32.xlu0 %v1840
        %v1842 = vpop.xlane.xlu0 %1841
        %v1843 = vadd.f32 %v1722, %v1724
        %1844 = vadd.xlane.f32.xlu0 %v1843
        %v1845 = vpop.xlane.xlu0 %1844
        %v1846 = vadd.f32 %v1726, %v1728
        %1847 = vadd.xlane.f32.xlu0 %v1846
        %v1848 = vpop.xlane.xlu0 %1847
        %v1849 = vadd.f32 %v1730, %v1732
        %1850 = vadd.xlane.f32.xlu0 %v1849
        %v1851 = vpop.xlane.xlu0 %1850
        %v1852 = vadd.f32 %v1734, %v1736
        %1853 = vadd.xlane.f32.xlu0 %v1852
        %v1854 = vpop.xlane.xlu0 %1853
        %v1855 = vadd.f32 %v1738, %v1740
        %1856 = vadd.xlane.f32.xlu0 %v1855
        %v1857 = vpop.xlane.xlu0 %1856
        %v1858 = vadd.f32 %v1742, %v1744
        %1859 = vadd.xlane.f32.xlu0 %v1858
        %v1860 = vpop.xlane.xlu0 %1859
        %v1861 = vadd.f32 %v1746, %v1748
        %1862 = vadd.xlane.f32.xlu0 %v1861
        %v1863 = vpop.xlane.xlu0 %1862
        %v1864 = vadd.f32 %v1750, %v1752
        %1865 = vadd.xlane.f32.xlu0 %v1864
        %v1866 = vpop.xlane.xlu0 %1865
        %v1867 = vadd.f32 %v1754, %v1756
        %1868 = vadd.xlane.f32.xlu0 %v1867
        %v1869 = vpop.xlane.xlu0 %1868
        %v1870 = vadd.f32 %v1758, %v1760
        %1871 = vadd.xlane.f32.xlu0 %v1870
        %v1872 = vpop.xlane.xlu0 %1871
        %v1873 = vadd.f32 %v1762, %v1764
        %1874 = vadd.xlane.f32.xlu0 %v1873
        %v1875 = vpop.xlane.xlu0 %1874
        %v1876 = vadd.f32 %v1766, %v1768
        %1877 = vadd.xlane.f32.xlu0 %v1876
        %v1878 = vpop.xlane.xlu0 %1877
        %v1879 = vadd.f32 %v1770, %v1772
        %1880 = vadd.xlane.f32.xlu0 %v1879
        %v1881 = vpop.xlane.xlu0 %1880
        %v1882 = vadd.f32 %v1774, %v1776
        %1883 = vadd.xlane.f32.xlu0 %v1882
        %v1884 = vpop.xlane.xlu0 %1883
        %v1885 = vadd.f32 %v1778, %v1780
        %1886 = vadd.xlane.f32.xlu0 %v1885
        %v1887 = vpop.xlane.xlu0 %1886
        %v1888 = vadd.f32 %v1782, %v1784
        %1889 = vadd.xlane.f32.xlu0 %v1888
        %v1890 = vpop.xlane.xlu0 %1889
        %v1891 = vadd.f32 %v1786, %v1788
        %1892 = vadd.xlane.f32.xlu0 %v1891
        %v1893 = vpop.xlane.xlu0 %1892
        %v1894 = vadd.f32 %v1790, %v1792
        %1895 = vadd.xlane.f32.xlu0 %v1894
        %v1896 = vpop.xlane.xlu0 %1895
        %v1897 = vadd.f32 %v1794, %v1796
        %1898 = vadd.xlane.f32.xlu0 %v1897
        %v1899 = vpop.xlane.xlu0 %1898
        %v1900 = vadd.f32 %v1798, %v1800
        %1901 = vadd.xlane.f32.xlu0 %v1900
        %v1902 = vpop.xlane.xlu0 %1901
        %v1903 = vadd.f32 %v1802, %v1804
        %1904 = vadd.xlane.f32.xlu0 %v1903
        %v1905 = vpop.xlane.xlu0 %1904
        %v1906 = vadd.f32 %v1806, %v1808
        %1907 = vadd.xlane.f32.xlu0 %v1906
        %v1908 = vpop.xlane.xlu0 %1907
        %v1909 = vadd.f32 %v1810, %v1812
        %1910 = vadd.xlane.f32.xlu0 %v1909
        %v1911 = vpop.xlane.xlu0 %1910
        %v1912 = vadd.f32 %v1814, %v1816
        %1913 = vadd.xlane.f32.xlu0 %v1912
        %v1914 = vpop.xlane.xlu0 %1913
        %v1915 = vadd.f32 %v1818, %v1820
        %1916 = vadd.xlane.f32.xlu0 %v1915
        %v1917 = vpop.xlane.xlu0 %1916
        %v1918 = vadd.f32 %v1822, %v1824
        %1919 = vadd.xlane.f32.xlu0 %v1918
        %v1920 = vpop.xlane.xlu0 %1919
        %v1921 = vrcp.pop %v1827
        %v1922 = vrcp.pop %v1830
        %v1923 = vrcp.pop %v1833
        %v1924 = vrcp.pop %v1836
        %v1925 = vrcp.pop %v1839
        %v1926 = vrcp.pop %v1842
        %v1927 = vrcp.pop %v1845
        %v1928 = vrcp.pop %v1848
        %v1929 = vrcp.pop %v1851
        %v1930 = vrcp.pop %v1854
        %v1931 = vrcp.pop %v1857
        %v1932 = vrcp.pop %v1860
        %v1933 = vrcp.pop %v1863
        %v1934 = vrcp.pop %v1866
        %v1935 = vrcp.pop %v1869
        %v1936 = vrcp.pop %v1872
        %v1937 = vrcp.pop %v1875
        %v1938 = vrcp.pop %v1878
        %v1939 = vrcp.pop %v1881
        %v1940 = vrcp.pop %v1884
        %v1941 = vrcp.pop %v1887
        %v1942 = vrcp.pop %v1890
        %v1943 = vrcp.pop %v1893
        %v1944 = vrcp.pop %v1896
        %v1945 = vrcp.pop %v1899
        %v1946 = vrcp.pop %v1902
        %v1947 = vrcp.pop %v1905
        %v1948 = vrcp.pop %v1908
        %v1949 = vrcp.pop %v1911
        %v1950 = vrcp.pop %v1914
        %v1951 = vrcp.pop %v1917
        %v1952 = vrcp.pop %v1920
        %v1953 = vmul.f32 %v1698, %v1921
        %v1954 = vmul.f32 %v1700, %v1921
        %v1955 = vmul.f32 %v1702, %v1922
        %v1956 = vmul.f32 %v1704, %v1922
        %v1957 = vmul.f32 %v1706, %v1923
        %v1958 = vmul.f32 %v1708, %v1923
        %v1959 = vmul.f32 %v1710, %v1924
        %v1960 = vmul.f32 %v1712, %v1924
        %v1961 = vmul.f32 %v1714, %v1925
        %v1962 = vmul.f32 %v1716, %v1925
        %v1963 = vmul.f32 %v1718, %v1926
        %v1964 = vmul.f32 %v1720, %v1926
        %v1965 = vmul.f32 %v1722, %v1927
        %v1966 = vmul.f32 %v1724, %v1927
        %v1967 = vmul.f32 %v1726, %v1928
        %v1968 = vmul.f32 %v1728, %v1928
        %v1969 = vmul.f32 %v1730, %v1929
        %v1970 = vmul.f32 %v1732, %v1929
        %v1971 = vmul.f32 %v1734, %v1930
        %v1972 = vmul.f32 %v1736, %v1930
        %v1973 = vmul.f32 %v1738, %v1931
        %v1974 = vmul.f32 %v1740, %v1931
        %v1975 = vmul.f32 %v1742, %v1932
        %v1976 = vmul.f32 %v1744, %v1932
        %v1977 = vmul.f32 %v1746, %v1933
        %v1978 = vmul.f32 %v1748, %v1933
        %v1979 = vmul.f32 %v1750, %v1934
        %v1980 = vmul.f32 %v1752, %v1934
        %v1981 = vmul.f32 %v1754, %v1935
        %v1982 = vmul.f32 %v1756, %v1935
        %v1983 = vmul.f32 %v1758, %v1936
        %v1984 = vmul.f32 %v1760, %v1936
        %v1985 = vmul.f32 %v1762, %v1937
        %v1986 = vmul.f32 %v1764, %v1937
        %v1987 = vmul.f32 %v1766, %v1938
        %v1988 = vmul.f32 %v1768, %v1938
        %v1989 = vmul.f32 %v1770, %v1939
        %v1990 = vmul.f32 %v1772, %v1939
        %v1991 = vmul.f32 %v1774, %v1940
        %v1992 = vmul.f32 %v1776, %v1940
        %v1993 = vmul.f32 %v1778, %v1941
        %v1994 = vmul.f32 %v1780, %v1941
        %v1995 = vmul.f32 %v1782, %v1942
        %v1996 = vmul.f32 %v1784, %v1942
        %v1997 = vmul.f32 %v1786, %v1943
        %v1998 = vmul.f32 %v1788, %v1943
        %v1999 = vmul.f32 %v1790, %v1944
        %v2000 = vmul.f32 %v1792, %v1944
        %v2001 = vmul.f32 %v1794, %v1945
        %v2002 = vmul.f32 %v1796, %v1945
        %v2003 = vmul.f32 %v1798, %v1946
        %v2004 = vmul.f32 %v1800, %v1946
        %v2005 = vmul.f32 %v1802, %v1947
        %v2006 = vmul.f32 %v1804, %v1947
        %v2007 = vmul.f32 %v1806, %v1948
        %v2008 = vmul.f32 %v1808, %v1948
        %v2009 = vmul.f32 %v1810, %v1949
        %v2010 = vmul.f32 %v1812, %v1949
        %v2011 = vmul.f32 %v1814, %v1950
        %v2012 = vmul.f32 %v1816, %v1950
        %v2013 = vmul.f32 %v1818, %v1951
        %v2014 = vmul.f32 %v1820, %v1951
        %v2015 = vmul.f32 %v1822, %v1952
        %v2016 = vmul.f32 %v1824, %v1952
        %v2017 = vld [vmem:[#allocation2] sm:$0xff]
        %v2018 = vld [vmem:[#allocation2 + $0x8] sm:$0xff]
        %v2019 = vld [vmem:[#allocation2 + $0x10] sm:$0xff]
        %v2020 = vld [vmem:[#allocation2 + $0x18] sm:$0xff]
        %v2021 = vld [vmem:[#allocation2 + $0x20] sm:$0xff]
        %v2022 = vld [vmem:[#allocation2 + $0x28] sm:$0xff]
        %v2023 = vld [vmem:[#allocation2 + $0x30] sm:$0xff]
        %v2024 = vld [vmem:[#allocation2 + $0x38] sm:$0xff]
        %v2025 = vld [vmem:[#allocation2 + $0x40] sm:$0xff]
        %v2026 = vld [vmem:[#allocation2 + $0x48] sm:$0xff]
        %v2027 = vld [vmem:[#allocation2 + $0x50] sm:$0xff]
        %v2028 = vld [vmem:[#allocation2 + $0x58] sm:$0xff]
        %v2029 = vld [vmem:[#allocation2 + $0x60] sm:$0xff]
        %v2030 = vld [vmem:[#allocation2 + $0x68] sm:$0xff]
        %v2031 = vld [vmem:[#allocation2 + $0x70] sm:$0xff]
        %v2032 = vld [vmem:[#allocation2 + $0x78] sm:$0xff]
        %v2033 = vpack.c.bf16 %v1955, %v1953
        %v2034 = vpack.c.bf16 %v1956, %v1954
        %v2035 = vpack.c.bf16 %v1959, %v1957
        %v2036 = vpack.c.bf16 %v1960, %v1958
        %v2037 = vpack.c.bf16 %v1963, %v1961
        %v2038 = vpack.c.bf16 %v1964, %v1962
        %v2039 = vpack.c.bf16 %v1967, %v1965
        %v2040 = vpack.c.bf16 %v1968, %v1966
        %v2041 = vpack.c.bf16 %v1971, %v1969
        %v2042 = vpack.c.bf16 %v1972, %v1970
        %v2043 = vpack.c.bf16 %v1975, %v1973
        %v2044 = vpack.c.bf16 %v1976, %v1974
        %v2045 = vpack.c.bf16 %v1979, %v1977
        %v2046 = vpack.c.bf16 %v1980, %v1978
        %v2047 = vpack.c.bf16 %v1983, %v1981
        %v2048 = vpack.c.bf16 %v1984, %v1982
        %v2049 = vpack.c.bf16 %v1987, %v1985
        %v2050 = vpack.c.bf16 %v1988, %v1986
        %v2051 = vpack.c.bf16 %v1991, %v1989
        %v2052 = vpack.c.bf16 %v1992, %v1990
        %v2053 = vpack.c.bf16 %v1995, %v1993
        %v2054 = vpack.c.bf16 %v1996, %v1994
        %v2055 = vpack.c.bf16 %v1999, %v1997
        %v2056 = vpack.c.bf16 %v2000, %v1998
        %v2057 = vpack.c.bf16 %v2003, %v2001
        %v2058 = vpack.c.bf16 %v2004, %v2002
        %v2059 = vpack.c.bf16 %v2007, %v2005
        %v2060 = vpack.c.bf16 %v2008, %v2006
        %v2061 = vpack.c.bf16 %v2011, %v2009
        %v2062 = vpack.c.bf16 %v2012, %v2010
        %v2063 = vpack.c.bf16 %v2015, %v2013
        %v2064 = vpack.c.bf16 %v2016, %v2014
        %2065 = vmatprep.subr.bf16.mxu0 0
        %2066 = vmatpush1.bf16.msra.mxu0 %v2017
        %2067 = vmatprep.subr.bf16.mxu0 0
        %2068 = vmatpush1.bf16.msra.mxu0 %v2018
        %2069 = vmatprep.subr.bf16.mxu0 0
        %2070 = vmatpush1.bf16.msra.mxu0 %v2019
        %2071 = vmatprep.subr.bf16.mxu0 0
        %2072 = vmatpush1.bf16.msra.mxu0 %v2020
        %2073 = vmatprep.subr.bf16.mxu0 0
        %2074 = vmatpush1.bf16.msra.mxu0 %v2021
        %2075 = vmatprep.subr.bf16.mxu0 0
        %2076 = vmatpush1.bf16.msra.mxu0 %v2022
        %2077 = vmatprep.subr.bf16.mxu0 0
        %2078 = vmatpush1.bf16.msra.mxu0 %v2023
        %2079 = vmatprep.subr.bf16.mxu0 0
        %2080 = vmatpush1.bf16.msra.mxu0 %v2024
        %2081 = vmatprep.subr.bf16.mxu0 0
        %2082 = vmatpush1.bf16.msra.mxu0 %v2025
        %2083 = vmatprep.subr.bf16.mxu0 0
        %2084 = vmatpush1.bf16.msra.mxu0 %v2026
        %2085 = vmatprep.subr.bf16.mxu0 0
        %2086 = vmatpush1.bf16.msra.mxu0 %v2027
        %2087 = vmatprep.subr.bf16.mxu0 0
        %2088 = vmatpush1.bf16.msra.mxu0 %v2028
        %2089 = vmatprep.subr.bf16.mxu0 0
        %2090 = vmatpush1.bf16.msra.mxu0 %v2029
        %2091 = vmatprep.subr.bf16.mxu0 0
        %2092 = vmatpush1.bf16.msra.mxu0 %v2030
        %2093 = vmatprep.subr.bf16.mxu0 0
        %2094 = vmatpush1.bf16.msra.mxu0 %v2031
        %2095 = vmatprep.subr.bf16.mxu0 0
        %2096 = vmatpush1.bf16.msra.mxu0 %v2032
        %2097 = vmatprep.mubr.bf16.mxu0 %v2034
        %2098 = vmatmul.mubr.bf16.gmra.mrb[0].mxu0 %v2033
        %v2099 = vpop.f32.mrb[0].mxu0
        %v2100 = vadd.f32 0.0, %v2099
        %v2101 = vpop.f32.mrb[0].mxu0
        %v2102 = vpop.f32.mrb[0].mxu0
        %v2103 = vadd.f32 0.0, %v2102
        %v2104 = vpop.f32.mrb[0].mxu0
        %2105 = vmatprep.mubr.bf16.mxu0 %v2036
        %2106 = vmatmul.mubr.bf16.gmra.mrb[0].mxu0 %v2035
        %v2107 = vpop.f32.mrb[0].mxu0
        %v2108 = vadd.f32 0.0, %v2107
        %v2109 = vpop.f32.mrb[0].mxu0
        %v2110 = vpop.f32.mrb[0].mxu0
        %v2111 = vadd.f32 0.0, %v2110
        %v2112 = vpop.f32.mrb[0].mxu0
        %2113 = vmatprep.mubr.bf16.mxu0 %v2038
        %2114 = vmatmul.mubr.bf16.gmra.mrb[0].mxu0 %v2037
        %v2115 = vpop.f32.mrb[0].mxu0
        %v2116 = vadd.f32 0.0, %v2115
        %v2117 = vpop.f32.mrb[0].mxu0
        %v2118 = vpop.f32.mrb[0].mxu0
        %v2119 = vadd.f32 0.0, %v2118
        %v2120 = vpop.f32.mrb[0].mxu0
        %2121 = vmatprep.mubr.bf16.mxu0 %v2040
        %2122 = vmatmul.mubr.bf16.gmra.mrb[0].mxu0 %v2039
        %v2123 = vpop.f32.mrb[0].mxu0
        %v2124 = vadd.f32 0.0, %v2123
        %v2125 = vpop.f32.mrb[0].mxu0
        %v2126 = vpop.f32.mrb[0].mxu0
        %v2127 = vadd.f32 0.0, %v2126
        %v2128 = vpop.f32.mrb[0].mxu0
        %2129 = vmatprep.mubr.bf16.mxu0 %v2042
        %2130 = vmatmul.mubr.bf16.gmra.mrb[0].mxu0 %v2041
        %v2131 = vpop.f32.mrb[0].mxu0
        %v2132 = vadd.f32 0.0, %v2131
        %v2133 = vpop.f32.mrb[0].mxu0
        %v2134 = vpop.f32.mrb[0].mxu0
        %v2135 = vadd.f32 0.0, %v2134
        %v2136 = vpop.f32.mrb[0].mxu0
        %2137 = vmatprep.mubr.bf16.mxu0 %v2044
        %2138 = vmatmul.mubr.bf16.gmra.mrb[0].mxu0 %v2043
        %v2139 = vpop.f32.mrb[0].mxu0
        %v2140 = vadd.f32 0.0, %v2139
        %v2141 = vpop.f32.mrb[0].mxu0
        %v2142 = vpop.f32.mrb[0].mxu0
        %v2143 = vadd.f32 0.0, %v2142
        %v2144 = vpop.f32.mrb[0].mxu0
        %2145 = vmatprep.mubr.bf16.mxu0 %v2046
        %2146 = vmatmul.mubr.bf16.gmra.mrb[0].mxu0 %v2045
        %v2147 = vpop.f32.mrb[0].mxu0
        %v2148 = vadd.f32 0.0, %v2147
        %v2149 = vpop.f32.mrb[0].mxu0
        %v2150 = vpop.f32.mrb[0].mxu0
        %v2151 = vadd.f32 0.0, %v2150
        %v2152 = vpop.f32.mrb[0].mxu0
        %2153 = vmatprep.mubr.bf16.mxu0 %v2048
        %2154 = vmatmul.mubr.bf16.gmra.mrb[0].mxu0 %v2047
        %v2155 = vpop.f32.mrb[0].mxu0
        %v2156 = vadd.f32 0.0, %v2155
        %v2157 = vpop.f32.mrb[0].mxu0
        %v2158 = vpop.f32.mrb[0].mxu0
        %v2159 = vadd.f32 0.0, %v2158
        %v2160 = vpop.f32.mrb[0].mxu0
        %2161 = vmatprep.mubr.bf16.mxu0 %v2050
        %2162 = vmatmul.mubr.bf16.gmra.mrb[0].mxu0 %v2049
        %v2163 = vpop.f32.mrb[0].mxu0
        %v2164 = vadd.f32 0.0, %v2163
        %v2165 = vpop.f32.mrb[0].mxu0
        %v2166 = vpop.f32.mrb[0].mxu0
        %v2167 = vadd.f32 0.0, %v2166
        %v2168 = vpop.f32.mrb[0].mxu0
        %2169 = vmatprep.mubr.bf16.mxu0 %v2052
        %2170 = vmatmul.mubr.bf16.gmra.mrb[0].mxu0 %v2051
        %v2171 = vpop.f32.mrb[0].mxu0
        %v2172 = vadd.f32 0.0, %v2171
        %v2173 = vpop.f32.mrb[0].mxu0
        %v2174 = vpop.f32.mrb[0].mxu0
        %v2175 = vadd.f32 0.0, %v2174
        %v2176 = vpop.f32.mrb[0].mxu0
        %2177 = vmatprep.mubr.bf16.mxu0 %v2054
        %2178 = vmatmul.mubr.bf16.gmra.mrb[0].mxu0 %v2053
        %v2179 = vpop.f32.mrb[0].mxu0
        %v2180 = vadd.f32 0.0, %v2179
        %v2181 = vpop.f32.mrb[0].mxu0
        %v2182 = vpop.f32.mrb[0].mxu0
        %v2183 = vadd.f32 0.0, %v2182
        %v2184 = vpop.f32.mrb[0].mxu0
        %2185 = vmatprep.mubr.bf16.mxu0 %v2056
        %2186 = vmatmul.mubr.bf16.gmra.mrb[0].mxu0 %v2055
        %v2187 = vpop.f32.mrb[0].mxu0
        %v2188 = vadd.f32 0.0, %v2187
        %v2189 = vpop.f32.mrb[0].mxu0
        %v2190 = vpop.f32.mrb[0].mxu0
        %v2191 = vadd.f32 0.0, %v2190
        %v2192 = vpop.f32.mrb[0].mxu0
        %2193 = vmatprep.mubr.bf16.mxu0 %v2058
        %2194 = vmatmul.mubr.bf16.gmra.mrb[0].mxu0 %v2057
        %v2195 = vpop.f32.mrb[0].mxu0
        %v2196 = vadd.f32 0.0, %v2195
        %v2197 = vpop.f32.mrb[0].mxu0
        %v2198 = vpop.f32.mrb[0].mxu0
        %v2199 = vadd.f32 0.0, %v2198
        %v2200 = vpop.f32.mrb[0].mxu0
        %2201 = vmatprep.mubr.bf16.mxu0 %v2060
        %2202 = vmatmul.mubr.bf16.gmra.mrb[0].mxu0 %v2059
        %v2203 = vpop.f32.mrb[0].mxu0
        %v2204 = vadd.f32 0.0, %v2203
        %v2205 = vpop.f32.mrb[0].mxu0
        %v2206 = vpop.f32.mrb[0].mxu0
        %v2207 = vadd.f32 0.0, %v2206
        %v2208 = vpop.f32.mrb[0].mxu0
        %2209 = vmatprep.mubr.bf16.mxu0 %v2062
        %2210 = vmatmul.mubr.bf16.gmra.mrb[0].mxu0 %v2061
        %v2211 = vpop.f32.mrb[0].mxu0
        %v2212 = vadd.f32 0.0, %v2211
        %v2213 = vpop.f32.mrb[0].mxu0
        %v2214 = vpop.f32.mrb[0].mxu0
        %v2215 = vadd.f32 0.0, %v2214
        %v2216 = vpop.f32.mrb[0].mxu0
        %2217 = vmatprep.mubr.bf16.mxu0 %v2064
        %2218 = vmatmul.mubr.bf16.gmra.mrb[0].mxu0 %v2063
        %v2219 = vpop.f32.mrb[0].mxu0
        %v2220 = vadd.f32 0.0, %v2219
        %v2221 = vpop.f32.mrb[0].mxu0
        %v2222 = vpop.f32.mrb[0].mxu0
        %v2223 = vadd.f32 0.0, %v2222
        %v2224 = vpop.f32.mrb[0].mxu0
        %2225 = vdwg.mxu0
        %vm2226 = vcmp.gt.f32.partialorder %v2100, 0.0
        %vm2227 = vcmp.gt.f32.partialorder %v2103, 0.0
        %vm2228 = vcmp.gt.f32.partialorder %v2108, 0.0
        %vm2229 = vcmp.gt.f32.partialorder %v2111, 0.0
        %vm2230 = vcmp.gt.f32.partialorder %v2116, 0.0
        %vm2231 = vcmp.gt.f32.partialorder %v2119, 0.0
        %vm2232 = vcmp.gt.f32.partialorder %v2124, 0.0
        %vm2233 = vcmp.gt.f32.partialorder %v2127, 0.0
        %vm2234 = vcmp.gt.f32.partialorder %v2132, 0.0
        %vm2235 = vcmp.gt.f32.partialorder %v2135, 0.0
        %vm2236 = vcmp.gt.f32.partialorder %v2140, 0.0
        %vm2237 = vcmp.gt.f32.partialorder %v2143, 0.0
        %vm2238 = vcmp.gt.f32.partialorder %v2148, 0.0
        %vm2239 = vcmp.gt.f32.partialorder %v2151, 0.0
        %vm2240 = vcmp.gt.f32.partialorder %v2156, 0.0
        %vm2241 = vcmp.gt.f32.partialorder %v2159, 0.0
        %vm2242 = vcmp.gt.f32.partialorder %v2164, 0.0
        %vm2243 = vcmp.gt.f32.partialorder %v2167, 0.0
        %vm2244 = vcmp.gt.f32.partialorder %v2172, 0.0
        %vm2245 = vcmp.gt.f32.partialorder %v2175, 0.0
        %vm2246 = vcmp.gt.f32.partialorder %v2180, 0.0
        %vm2247 = vcmp.gt.f32.partialorder %v2183, 0.0
        %vm2248 = vcmp.gt.f32.partialorder %v2188, 0.0
        %vm2249 = vcmp.gt.f32.partialorder %v2191, 0.0
        %vm2250 = vcmp.gt.f32.partialorder %v2196, 0.0
        %vm2251 = vcmp.gt.f32.partialorder %v2199, 0.0
        %vm2252 = vcmp.gt.f32.partialorder %v2204, 0.0
        %vm2253 = vcmp.gt.f32.partialorder %v2207, 0.0
        %vm2254 = vcmp.gt.f32.partialorder %v2212, 0.0
        %vm2255 = vcmp.gt.f32.partialorder %v2215, 0.0
        %vm2256 = vcmp.gt.f32.partialorder %v2220, 0.0
        %vm2257 = vcmp.gt.f32.partialorder %v2223, 0.0
        %v2258 = vmin.f32 %v2100, 0.0
        %v2259 = vmin.f32 %v2103, 0.0
        %v2260 = vmin.f32 %v2108, 0.0
        %v2261 = vmin.f32 %v2111, 0.0
        %v2262 = vmin.f32 %v2116, 0.0
        %v2263 = vmin.f32 %v2119, 0.0
        %v2264 = vmin.f32 %v2124, 0.0
        %v2265 = vmin.f32 %v2127, 0.0
        %v2266 = vmin.f32 %v2132, 0.0
        %v2267 = vmin.f32 %v2135, 0.0
        %v2268 = vmin.f32 %v2140, 0.0
        %v2269 = vmin.f32 %v2143, 0.0
        %v2270 = vmin.f32 %v2148, 0.0
        %v2271 = vmin.f32 %v2151, 0.0
        %v2272 = vmin.f32 %v2156, 0.0
        %v2273 = vmin.f32 %v2159, 0.0
        %v2274 = vmin.f32 %v2164, 0.0
        %v2275 = vmin.f32 %v2167, 0.0
        %v2276 = vmin.f32 %v2172, 0.0
        %v2277 = vmin.f32 %v2175, 0.0
        %v2278 = vmin.f32 %v2180, 0.0
        %v2279 = vmin.f32 %v2183, 0.0
        %v2280 = vmin.f32 %v2188, 0.0
        %v2281 = vmin.f32 %v2191, 0.0
        %v2282 = vmin.f32 %v2196, 0.0
        %v2283 = vmin.f32 %v2199, 0.0
        %v2284 = vmin.f32 %v2204, 0.0
        %v2285 = vmin.f32 %v2207, 0.0
        %v2286 = vmin.f32 %v2212, 0.0
        %v2287 = vmin.f32 %v2215, 0.0
        %v2288 = vmin.f32 %v2220, 0.0
        %v2289 = vmin.f32 %v2223, 0.0
        %v2290 = vmul.f32 %v2258, 1.442695
        %v2291 = vpow.pop %v2290
        %v2292 = vmul.f32 %v2259, 1.442695
        %v2293 = vpow.pop %v2292
        %v2294 = vmul.f32 %v2260, 1.442695
        %v2295 = vpow.pop %v2294
        %v2296 = vmul.f32 %v2261, 1.442695
        %v2297 = vpow.pop %v2296
        %v2298 = vmul.f32 %v2262, 1.442695
        %v2299 = vpow.pop %v2298
        %v2300 = vmul.f32 %v2263, 1.442695
        %v2301 = vpow.pop %v2300
        %v2302 = vmul.f32 %v2264, 1.442695
        %v2303 = vpow.pop %v2302
        %v2304 = vmul.f32 %v2265, 1.442695
        %v2305 = vpow.pop %v2304
        %v2306 = vmul.f32 %v2266, 1.442695
        %v2307 = vpow.pop %v2306
        %v2308 = vmul.f32 %v2267, 1.442695
        %v2309 = vpow.pop %v2308
        %v2310 = vmul.f32 %v2268, 1.442695
        %v2311 = vpow.pop %v2310
        %v2312 = vmul.f32 %v2269, 1.442695
        %v2313 = vpow.pop %v2312
        %v2314 = vmul.f32 %v2270, 1.442695
        %v2315 = vpow.pop %v2314
        %v2316 = vmul.f32 %v2271, 1.442695
        %v2317 = vpow.pop %v2316
        %v2318 = vmul.f32 %v2272, 1.442695
        %v2319 = vpow.pop %v2318
        %v2320 = vmul.f32 %v2273, 1.442695
        %v2321 = vpow.pop %v2320
        %v2322 = vmul.f32 %v2274, 1.442695
        %v2323 = vpow.pop %v2322
        %v2324 = vmul.f32 %v2275, 1.442695
        %v2325 = vpow.pop %v2324
        %v2326 = vmul.f32 %v2276, 1.442695
        %v2327 = vpow.pop %v2326
        %v2328 = vmul.f32 %v2277, 1.442695
        %v2329 = vpow.pop %v2328
        %v2330 = vmul.f32 %v2278, 1.442695
        %v2331 = vpow.pop %v2330
        %v2332 = vmul.f32 %v2279, 1.442695
        %v2333 = vpow.pop %v2332
        %v2334 = vmul.f32 %v2280, 1.442695
        %v2335 = vpow.pop %v2334
        %v2336 = vmul.f32 %v2281, 1.442695
        %v2337 = vpow.pop %v2336
        %v2338 = vmul.f32 %v2282, 1.442695
        %v2339 = vpow.pop %v2338
        %v2340 = vmul.f32 %v2283, 1.442695
        %v2341 = vpow.pop %v2340
        %v2342 = vmul.f32 %v2284, 1.442695
        %v2343 = vpow.pop %v2342
        %v2344 = vmul.f32 %v2285, 1.442695
        %v2345 = vpow.pop %v2344
        %v2346 = vmul.f32 %v2286, 1.442695
        %v2347 = vpow.pop %v2346
        %v2348 = vmul.f32 %v2287, 1.442695
        %v2349 = vpow.pop %v2348
        %v2350 = vmul.f32 %v2288, 1.442695
        %v2351 = vpow.pop %v2350
        %v2352 = vmul.f32 %v2289, 1.442695
        %v2353 = vpow.pop %v2352
        %v2354 = vsub.f32 %v2291, 1.0
        %v2355 = vsub.f32 %v2293, 1.0
        %v2356 = vsub.f32 %v2295, 1.0
        %v2357 = vsub.f32 %v2297, 1.0
        %v2358 = vsub.f32 %v2299, 1.0
        %v2359 = vsub.f32 %v2301, 1.0
        %v2360 = vsub.f32 %v2303, 1.0
        %v2361 = vsub.f32 %v2305, 1.0
        %v2362 = vsub.f32 %v2307, 1.0
        %v2363 = vsub.f32 %v2309, 1.0
        %v2364 = vsub.f32 %v2311, 1.0
        %v2365 = vsub.f32 %v2313, 1.0
        %v2366 = vsub.f32 %v2315, 1.0
        %v2367 = vsub.f32 %v2317, 1.0
        %v2368 = vsub.f32 %v2319, 1.0
        %v2369 = vsub.f32 %v2321, 1.0
        %v2370 = vsub.f32 %v2323, 1.0
        %v2371 = vsub.f32 %v2325, 1.0
        %v2372 = vsub.f32 %v2327, 1.0
        %v2373 = vsub.f32 %v2329, 1.0
        %v2374 = vsub.f32 %v2331, 1.0
        %v2375 = vsub.f32 %v2333, 1.0
        %v2376 = vsub.f32 %v2335, 1.0
        %v2377 = vsub.f32 %v2337, 1.0
        %v2378 = vsub.f32 %v2339, 1.0
        %v2379 = vsub.f32 %v2341, 1.0
        %v2380 = vsub.f32 %v2343, 1.0
        %v2381 = vsub.f32 %v2345, 1.0
        %v2382 = vsub.f32 %v2347, 1.0
        %v2383 = vsub.f32 %v2349, 1.0
        %v2384 = vsub.f32 %v2351, 1.0
        %v2385 = vsub.f32 %v2353, 1.0
        %v2386 = vsel %vm2226, %v2100, %v2354
        %v2387 = vsel %vm2227, %v2103, %v2355
        %v2388 = vsel %vm2228, %v2108, %v2356
        %v2389 = vsel %vm2229, %v2111, %v2357
        %v2390 = vsel %vm2230, %v2116, %v2358
        %v2391 = vsel %vm2231, %v2119, %v2359
        %v2392 = vsel %vm2232, %v2124, %v2360
        %v2393 = vsel %vm2233, %v2127, %v2361
        %v2394 = vsel %vm2234, %v2132, %v2362
        %v2395 = vsel %vm2235, %v2135, %v2363
        %v2396 = vsel %vm2236, %v2140, %v2364
        %v2397 = vsel %vm2237, %v2143, %v2365
        %v2398 = vsel %vm2238, %v2148, %v2366
        %v2399 = vsel %vm2239, %v2151, %v2367
        %v2400 = vsel %vm2240, %v2156, %v2368
        %v2401 = vsel %vm2241, %v2159, %v2369
        %v2402 = vsel %vm2242, %v2164, %v2370
        %v2403 = vsel %vm2243, %v2167, %v2371
        %v2404 = vsel %vm2244, %v2172, %v2372
        %v2405 = vsel %vm2245, %v2175, %v2373
        %v2406 = vsel %vm2246, %v2180, %v2374
        %v2407 = vsel %vm2247, %v2183, %v2375
        %v2408 = vsel %vm2248, %v2188, %v2376
        %v2409 = vsel %vm2249, %v2191, %v2377
        %v2410 = vsel %vm2250, %v2196, %v2378
        %v2411 = vsel %vm2251, %v2199, %v2379
        %v2412 = vsel %vm2252, %v2204, %v2380
        %v2413 = vsel %vm2253, %v2207, %v2381
        %v2414 = vsel %vm2254, %v2212, %v2382
        %v2415 = vsel %vm2255, %v2215, %v2383
        %v2416 = vsel %vm2256, %v2220, %v2384
        %v2417 = vsel %vm2257, %v2223, %v2385
        %2418 = vst [vmem:[%s232] sm:$0xff] %v2386
        %2419 = vst [vmem:[%s232 + $0x8] sm:$0xff] %v2387
        %2420 = vst [vmem:[%s232 + $0x10] sm:$0xff] %v2388
        %2421 = vst [vmem:[%s232 + $0x18] sm:$0xff] %v2389
        %2422 = vst [vmem:[%s232 + $0x20] sm:$0xff] %v2390
        %2423 = vst [vmem:[%s232 + $0x28] sm:$0xff] %v2391
        %2424 = vst [vmem:[%s232 + $0x30] sm:$0xff] %v2392
        %2425 = vst [vmem:[%s232 + $0x38] sm:$0xff] %v2393
        %2426 = vst [vmem:[%s232 + $0x40] sm:$0xff] %v2394
        %2427 = vst [vmem:[%s232 + $0x48] sm:$0xff] %v2395
        %2428 = vst [vmem:[%s232 + $0x50] sm:$0xff] %v2396
        %2429 = vst [vmem:[%s232 + $0x58] sm:$0xff] %v2397
        %2430 = vst [vmem:[%s232 + $0x60] sm:$0xff] %v2398
        %2431 = vst [vmem:[%s232 + $0x68] sm:$0xff] %v2399
        %2432 = vst [vmem:[%s232 + $0x70] sm:$0xff] %v2400
        %2433 = vst [vmem:[%s232 + $0x78] sm:$0xff] %v2401
        %2434 = vst [vmem:[%s232 + $0x80] sm:$0xff] %v2402
        %2435 = vst [vmem:[%s232 + $0x88] sm:$0xff] %v2403
        %2436 = vst [vmem:[%s232 + $0x90] sm:$0xff] %v2404
        %2437 = vst [vmem:[%s232 + $0x98] sm:$0xff] %v2405
        %2438 = vst [vmem:[%s232 + $0xa0] sm:$0xff] %v2406
        %2439 = vst [vmem:[%s232 + $0xa8] sm:$0xff] %v2407
        %2440 = vst [vmem:[%s232 + $0xb0] sm:$0xff] %v2408
        %2441 = vst [vmem:[%s232 + $0xb8] sm:$0xff] %v2409
        %2442 = vst [vmem:[%s232 + $0xc0] sm:$0xff] %v2410
        %2443 = vst [vmem:[%s232 + $0xc8] sm:$0xff] %v2411
        %2444 = vst [vmem:[%s232 + $0xd0] sm:$0xff] %v2412
        %2445 = vst [vmem:[%s232 + $0xd8] sm:$0xff] %v2413
        %2446 = vst [vmem:[%s232 + $0xe0] sm:$0xff] %v2414
        %2447 = vst [vmem:[%s232 + $0xe8] sm:$0xff] %v2415
        %2448 = vst [vmem:[%s232 + $0xf0] sm:$0xff] %v2416
        %2449 = vst [vmem:[%s232 + $0xf8] sm:$0xff] %v2417
        %s2450 = sand.u32 %s136, 1
        %s2451 = scalar_lea.sflag [#allocation5], %s2450
        %s2452 = sand.u32 %s136, 1
        %s2453 = smul.addr %s2452, 256
        %s2454 = scalar_lea.vmem [#allocation4], %s2453
        // Predicated region
        $region41: #{tpu_custom_call.1} parent=35 // pred_check
          %p2455 = pneg %p146
        $region42: #{tpu_custom_call.1} parent=35 // pred_check_branch
          %2457 = sbr.rel (%p2455) target = $region44
        $region43: #{tpu_custom_call.1} parent=35 // pred_region
          %s2458 = smul.u32 32, %s23
          %s2460 = ssub.s32 4096, 4096
          %2461 = vsyncadd %s2451, %s2460
          %s2462 = smul.addr %s22, 32
          %s2463 = sadd.s32 %s2458, %s2462
          %s2464 = smul.addr %s2463, 128
          %s2465 = scalar_lea.hbm %s4, %s2464
          %s2466 = sshll.u32 %s2454, 4
          %s2467 = int_to_ptr.vmem [resolvable:$true] %s2466
          %2472 = dma.vmem_to_hbm [thread:$0]  %s2467, 4096, %s2465, %s2451, 128, 128, 8
        $region44: #{tpu_custom_call.1} parent=35 // pred_fallthru
          _
      $region36: #{tpu_custom_call.1} parent=5 // pred_fallthru
        _
      %p2473 = scmp.le.s32.totalorder 2, %s13
      // Predicated region
      $region45: #{tpu_custom_call.1} parent=5 // pred_check
        %p2474 = pneg %p2473
      $region46: #{tpu_custom_call.1} parent=5 // pred_check_branch
        %2476 = sbr.rel (%p2474) target = $region48
      $region47: #{tpu_custom_call.1} parent=5 // pred_region
        %s2477 = ssub.s32 %s13, 2
        // Predicated region
        $region49: #{tpu_custom_call.1} parent=47 // pred_check
          %p2478 = pneg %p152
        $region50: #{tpu_custom_call.1} parent=47 // pred_check_branch
          %2480 = sbr.rel (%p2478) target = $region52
        $region51: #{tpu_custom_call.1} parent=47 // pred_region
          %s2481 = sand.u32 %s137, 1
          %s2482 = scalar_lea.sflag [#allocation5], %s2481
          %s2483 = sand.u32 %s137, 1
          %s2484 = smul.addr %s2483, 256
          %s2485 = scalar_lea.vmem [#allocation4], %s2484
          %2486 = dma.done %s2482, 4096
        $region52: #{tpu_custom_call.1} parent=47 // pred_fallthru
          _
      $region48: #{tpu_custom_call.1} parent=5 // pred_fallthru
        _
    $region6: #{tpu_custom_call.1} parent=1 // loop_footer
      %s17 = sadd.s32 1, %s13
    $region7: #{tpu_custom_call.1} parent=1 // loop_footer_branch
      %12 = sbr.rel target = $region3
    $region8: #{tpu_custom_call.1} parent=1 // loop_exit
      _
    %2487 = vsyncpa [#allocation5], 1
    %s2488 = scalar_lea.sflag [#allocation5], 1
    %2489 = vsyncpa %s2488, 1

</llo_original>
